<compile_context>
chip_gen: v7x
topology: tpu7x:2x2x1
jax: 0.10.0
libtpu: 0.0.40
codegen_flags: <defaults>
</compile_context>

<pallas_src>
import functools

import jax
import jax.numpy as jnp
from jax import lax
from jax.experimental import pallas as pl
from jax.experimental.pallas import tpu as pltpu


def _round_up(x, m):
    return (x + m - 1) // m * m


# ----------------------------------------------------------------------------
# Fused neck kernel (one grid step per TensorCore, NCHW-flat layout)
# ----------------------------------------------------------------------------
def _neck_kernel(c5u_ref, c4_ref, w1_ref, b1_ref, *rest,
                 spatial_w, kh, kw, pad_lanes, compute_final):
    """Per grid step (spatial dims flattened onto the lane axis):
      c5u_ref : (bt, C5, H*W)       nearest-2x pre-upsampled C5, flat
      c4_ref  : (bt, C4, H*W)       next feature map, flat
      w1_ref  : (Cout1, C5)         1x1 lateral conv weight
      b1_ref  : (Cout1, 1)
      if compute_final, `rest` also carries:
        w2_ref  : (KH*KW, Cout2, CPAD)  3x3 conv weight, tap-major, chan-padded
        b2_ref  : (Cout2, 1)
        o3_ref  : (bt, Cout2, H*W)      final 3x3 conv output
        wide_ref: (CPAD, pad + H*W + pad) zero-bordered scratch for tap shifts
      o2_ref  : (bt, Cout1+C4, H*W)  Concat output (returned by the module)
    """
    bt = c5u_ref.shape[0]
    cout1 = w1_ref.shape[0]
    c4ch = c4_ref.shape[1]
    hw = c4_ref.shape[2]
    left = pad_lanes

    w1 = w1_ref[...]
    b1 = b1_ref[...]

    if compute_final:
        w2_ref, b2_ref, o2_ref, o3_ref, wide_ref = rest
        cpad = wide_ref.shape[0]
        wide_w = wide_ref.shape[1]
        cout2 = o3_ref.shape[1]
        ccat = cout1 + c4ch

        # Zero only the regions that must stay zero (the 'same'-padding lane
        # borders for the vertical taps and the pad-channel rows); the centre
        # rows are fully overwritten for every batch element.
        wide_ref[:, 0:left] = jnp.zeros((cpad, left), jnp.float32)
        wide_ref[:, left + hw:] = jnp.zeros((cpad, wide_w - left - hw),
                                            jnp.float32)
        if ccat < cpad:
            wide_ref[ccat:, :] = jnp.zeros((cpad - ccat, wide_w), jnp.float32)

        # Horizontal-wrap masks, hoisted: one per dw offset, shared by all kh
        # taps and all batch elements in this grid step.
        j_idx = lax.broadcasted_iota(jnp.int32, (cpad, hw), 1) % spatial_w
        masks = {}
        for ikw in range(kw):
            dw = ikw - (kw - 1) // 2
            if dw < 0:
                masks[dw] = j_idx >= -dw
            elif dw > 0:
                masks[dw] = j_idx < spatial_w - dw

        # Per-tap weight slabs (tiny), loaded once per grid step.
        w2_taps = [w2_ref[t] for t in range(kh * kw)]   # each (Cout2, CPAD)
        b2 = b2_ref[...]                                 # (Cout2, 1)
    else:
        (o2_ref,) = rest

    for b in range(bt):
        # ---- layers 0+1 folded: conv1x1(upsample(C5)) == upsample(conv1x1(C5))
        # The wrapper recovers the layer-0 output bit-exactly by strided-
        # slicing the concat output, so only the upsampled branch is computed
        # here (keeps every store hw-lane dense; no 64-lane masked o1 store).
        x2 = jnp.dot(w1, c5u_ref[b], preferred_element_type=jnp.float32) + b1
        c4b = c4_ref[b]

        # ---- layer 2: channel concat (the returned output) ----
        o2_ref[b, 0:cout1, :] = x2.astype(o2_ref.dtype)
        o2_ref[b, cout1:cout1 + c4ch, :] = c4b.astype(o2_ref.dtype)

        if compute_final:
            # ---- layer 3: 3x3 'same' conv, per-tap accumulated matmuls ----
            # (computed only when asked for; the reference forward() does not
            # return it).  NOTE: odd kernel size and stride 1 assumed.
            wide_ref[0:cout1, left:left + hw] = x2
            wide_ref[cout1:cout1 + c4ch, left:left + hw] = c4b

            y3 = jnp.broadcast_to(b2, (cout2, hw))
            tap = 0
            for ikh in range(kh):
                dh = ikh - (kh - 1) // 2
                for ikw in range(kw):
                    dw = ikw - (kw - 1) // 2
                    s = dh * spatial_w + dw
                    # vertical out-of-image taps land in the zero border;
                    # only the horizontal wrap needs explicit masking.
                    slab = wide_ref[:, left + s:left + s + hw]   # (CPAD, H*W)
                    if dw != 0:
                        slab = jnp.where(masks[dw], slab, 0.0)
                    y3 = y3 + jnp.dot(w2_taps[tap], slab,
                                      preferred_element_type=jnp.float32)
                    tap += 1
            o3_ref[b] = y3.astype(o3_ref.dtype)


# ----------------------------------------------------------------------------
# Wrapper: single pallas_call for the whole neck
# ----------------------------------------------------------------------------
def _tc_parallel_steps(n):
    """One grid step per TensorCore: 2 on v7x (megacore batch split), 1 on
    single-TC v5e/v6e (whole batch folded into one step)."""
    try:
        kind = jax.devices()[0].device_kind.lower()
    except Exception:
        kind = ""
    cores = 2 if "v7" in kind else 1
    steps = max(1, min(n, cores))
    while n % steps:
        steps -= 1
    return steps


@functools.partial(jax.jit, static_argnames=("compute_final", "grid_steps"))
def _fused_neck(c5, c4, w1, b1, w2, b2, *, compute_final, grid_steps):
    """[Conv1x1 -> Upsample2x(nearest) -> Concat (-> Conv3x3)] fused.

    c5: (N, C5, H5, W5), c4: (N, C4, 2*H5, 2*W5), conv weights in OIHW.
    Returns (out_conv1x1, out_concat[, out_conv3x3]) in NCHW.
    """
    n, c5c, h5, w5 = c5.shape
    _, c4c, h, w = c4.shape
    hw = h * w
    cout1 = w1.shape[0]
    itemsize = jnp.dtype(c5.dtype).itemsize
    bt = n // grid_steps

    # NCHW -> (N, C, H*W) is a free row-major reshape; the tiny C5 is
    # pre-upsampled (a few KiB) so the kernel never redistributes lanes
    # (1x1 conv commutes with nearest upsample -> bit-exact).
    c5u = jnp.repeat(jnp.repeat(c5, 2, axis=2), 2, axis=3).reshape(n, c5c, hw)
    c4f = c4.reshape(n, c4c, hw)
    w1m = w1.reshape(cout1, c5c)
    b1m = b1.reshape(cout1, 1)

    in_arrays = [c5u, c4f, w1m, b1m]
    in_specs = [
        pl.BlockSpec((bt, c5c, hw), lambda i: (i, 0, 0)),
        pl.BlockSpec((bt, c4c, hw), lambda i: (i, 0, 0)),
        pl.BlockSpec((cout1, c5c), lambda i: (0, 0)),
        pl.BlockSpec((cout1, 1), lambda i: (0, 0)),
    ]
    out_shapes = [jax.ShapeDtypeStruct((n, cout1 + c4c, hw), c5.dtype)]
    out_specs = [pl.BlockSpec((bt, cout1 + c4c, hw), lambda i: (i, 0, 0))]
    scratch_shapes = []

    flops = 2 * n * cout1 * c5c * hw
    bytes_accessed = itemsize * (c5u.size + c4f.size + w1m.size + b1m.size
                                 + n * (cout1 + c4c) * hw)

    kkh = kkw = 1
    if compute_final:
        cout2, cin2, kkh, kkw = w2.shape
        cpad = _round_up(cin2, 8)    # channel-pad so tap slabs are tile aligned
        # zero lane border; must be >= (kh//2)*W + (kw//2) (vertical taps rely
        # purely on the border; only the horizontal wrap is masked in-kernel).
        pad_lanes = _round_up((kkh // 2) * w + (kkw // 2), 8)
        # tap-major weight layout: (KH*KW, Cout2, CPAD)
        w2p = jnp.transpose(w2, (2, 3, 0, 1))                # (kh, kw, O, I)
        w2p = jnp.pad(w2p, ((0, 0), (0, 0), (0, 0), (0, cpad - cin2)))
        w2m = w2p.reshape(kkh * kkw, cout2, cpad)
        b2m = b2.reshape(cout2, 1)

        in_arrays += [w2m, b2m]
        in_specs += [
            pl.BlockSpec((kkh * kkw, cout2, cpad), lambda i: (0, 0, 0)),
            pl.BlockSpec((cout2, 1), lambda i: (0, 0)),
        ]
        out_shapes.append(jax.ShapeDtypeStruct((n, cout2, hw), c5.dtype))
        out_specs.append(pl.BlockSpec((bt, cout2, hw), lambda i: (i, 0, 0)))
        scratch_shapes.append(
            pltpu.VMEM((cpad, 2 * pad_lanes + hw), jnp.float32))

        flops += 2 * n * cout2 * kkh * kkw * cpad * hw
        bytes_accessed += itemsize * (w2m.size + b2m.size + n * cout2 * hw)
    else:
        pad_lanes = 0

    kernel = functools.partial(_neck_kernel, spatial_w=w, kh=kkh, kw=kkw,
                               pad_lanes=pad_lanes, compute_final=compute_final)

    outs = pl.pallas_call(
        kernel,
        out_shape=tuple(out_shapes),
        grid=(grid_steps,),
        in_specs=in_specs,
        out_specs=tuple(out_specs),
        scratch_shapes=scratch_shapes,
        compiler_params=pltpu.CompilerParams(
            dimension_semantics=("parallel",)),   # batch across v7x's 2 TCs
        cost_estimate=pl.CostEstimate(flops=flops, transcendentals=0,
                                      bytes_accessed=bytes_accessed),
    )(*in_arrays)

    if compute_final:
        o2f, o3f = outs
    else:
        (o2f,) = outs

    o2 = o2f.reshape(n, cout1 + c4c, h, w)
    # layer-0 (1x1 conv on C5) output, recovered bit-exactly in the wrapper:
    # conv1x1 commutes with nearest 2x upsample, so the even-strided slice of
    # the upsampled-conv block of the concat equals conv1x1(C5).
    o1 = o2[:, :cout1, ::2, ::2]
    if compute_final:
        o3 = o3f.reshape(n, w2.shape[0], h, w)
        return o1, o2, o3
    return o1, o2


# ----------------------------------------------------------------------------
# Config / parameter construction (mirrors Neck.make_layers())
# ----------------------------------------------------------------------------
CFG = {
    "neck": [
        ["Conv",     [-1, 16, 1]],
        ["Upsample", [2]],
        ["Concat",   [1]],
        ["Conv",     [20, 16, 3]],
    ]
}
IN_DIMS = [8]


def build_neck_params(cfg, in_dims, key):
    """Returns [(kind, params), ...] with Conv weights in PyTorch OIHW."""
    in_dims = list(in_dims)
    layers = []
    for layer_def in cfg["neck"]:
        block, params = layer_def[0], list(layer_def[1])
        if block == "Conv":
            if params[0] == -1:
                params[0] = in_dims.pop(0)
            cin, cout, k = params
            key, kw_, kb_ = jax.random.split(key, 3)
            wgt = jax.random.normal(kw_, (cout, cin, k, k), jnp.float32) * 0.05
            bia = jax.random.normal(kb_, (cout,), jnp.float32) * 0.01
            layers.append(("Conv", (wgt, bia)))
        elif block == "Upsample":
            layers.append(("Upsample", params[0]))
        elif block == "Concat":
            layers.append(("Concat", params[0]))
        else:
            raise ValueError(block)
    return layers


def neck_forward(layers, feats_nchw, return_final=False):
    """FCOS Neck forward.  feats_nchw: [C5, C4] NCHW tensors.

    Returns [layer-0 (1x1 conv) output, Concat output] exactly like the
    reference forward(); the trailing 3x3 conv is only computed (and appended)
    when return_final=True — the default path compiles a variant that skips it.
    """
    kinds = [k for k, _ in layers]
    if kinds != ["Conv", "Upsample", "Concat", "Conv"]:
        # TODO(synk): other neck configs would need a generic per-layer path.
        raise NotImplementedError(
            "fused kernel implements the Conv/Upsample/Concat/Conv neck")
    w1, b1 = layers[0][1]
    assert layers[1][1] == 2, "fused kernel implements nearest 2x upsampling"
    w2, b2 = layers[3][1]
    c5, c4 = feats_nchw
    steps = _tc_parallel_steps(c5.shape[0])
    outs = _fused_neck(c5, c4, w1, b1, w2, b2,
                       compute_final=return_final, grid_steps=steps)
    if return_final:
        o1, o2, o3 = outs
        return [o1, o2, o3]
    o1, o2 = outs
    return [o1, o2]


# ----------------------------------------------------------------------------
if __name__ == "__main__":
    key = jax.random.PRNGKey(0)
    k5, k4, kp = jax.random.split(key, 3)

    # feats (NCHW, PyTorch convention): C5 deepest first, then C4
    c5 = jax.random.normal(k5, (2, 8, 8, 8), jnp.float32)      # (N, 8, 8, 8)
    c4 = jax.random.normal(k4, (2, 4, 16, 16), jnp.float32)    # (N, 4, 16, 16)

    layers = build_neck_params(CFG, IN_DIMS, kp)

    # diagnostic path (also exercises the 3x3-conv variant)
    outs = neck_forward(layers, [c5, c4], return_final=True)
    outs = [jax.block_until_ready(o) for o in outs]
    out0, out1, out_final = outs

    # ---- plain-XLA reference ----
    w1, b1 = layers[0][1]
    w2, b2 = layers[3][1]
    dn = ("NCHW", "OIHW", "NCHW")
    ref0 = lax.conv_general_dilated(c5, w1, (1, 1), "SAME",
                                    dimension_numbers=dn) + b1[None, :, None, None]
    ref_up = jnp.repeat(jnp.repeat(ref0, 2, axis=2), 2, axis=3)
    ref1 = jnp.concatenate([ref_up, c4], axis=1)
    ref_final = lax.conv_general_dilated(ref1, w2, (1, 1), "SAME",
                                         dimension_numbers=dn) + b2[None, :, None, None]

    assert out0.shape == (2, 16, 8, 8), out0.shape
    assert out1.shape == (2, 20, 16, 16), out1.shape
    assert out_final.shape == (2, 16, 16, 16), out_final.shape
    assert jnp.allclose(out0, ref0, atol=1e-4, rtol=1e-4)
    assert jnp.allclose(out1, ref1, atol=1e-4, rtol=1e-4)
    assert jnp.allclose(out_final, ref_final, atol=2e-4, rtol=2e-4)

    # module-semantics call (hot path): returns exactly
    # [layer-0 output, Concat output]; the 3x3 conv is not even compiled here.
    module_out = neck_forward(layers, [c5, c4])
    module_out = [jax.block_until_ready(o) for o in module_out]
    assert len(module_out) == 2
    assert jnp.allclose(module_out[0], ref0, atol=1e-4, rtol=1e-4)
    assert jnp.allclose(module_out[1], ref1, atol=1e-4, rtol=1e-4)

    print("KERNEL_OK")
</pallas_src>

<mosaic_0001>
module attributes {stable_mosaic.version = 11 : i64} {
  func.func @_neck_kernel(%arg0: i32, %arg1: memref<2x8x256xf32, #tpu.memory_space<vmem>>, %arg2: memref<2x4x256xf32, #tpu.memory_space<vmem>>, %arg3: memref<16x8xf32, #tpu.memory_space<vmem>>, %arg4: memref<16x1xf32, #tpu.memory_space<vmem>>, %arg5: memref<9x16x24xf32, #tpu.memory_space<vmem>>, %arg6: memref<16x1xf32, #tpu.memory_space<vmem>>, %arg7: memref<2x20x256xf32, #tpu.memory_space<vmem>>, %arg8: memref<2x16x256xf32, #tpu.memory_space<vmem>>, %arg9: memref<24x304xf32, #tpu.memory_space<vmem>>) attributes {dimension_semantics = [#tpu.dimension_semantics<parallel>], iteration_bounds = array<i64: 1>, scalar_prefetch = 0 : i64, scratch_operands = 1 : i64, tpu.core_type = #tpu.core_type<tc>, window_params = [{transform_indices = @transform_0, window_bounds = array<i64: 2, 8, 256>}, {transform_indices = @transform_1, window_bounds = array<i64: 2, 4, 256>}, {pipeline_mode = #tpu.pipeline_mode<synchronous>, transform_indices = @transform_2, window_bounds = array<i64: 16, 8>}, {pipeline_mode = #tpu.pipeline_mode<synchronous>, transform_indices = @transform_3, window_bounds = array<i64: 16, 1>}, {pipeline_mode = #tpu.pipeline_mode<synchronous>, transform_indices = @transform_4, window_bounds = array<i64: 9, 16, 24>}, {pipeline_mode = #tpu.pipeline_mode<synchronous>, transform_indices = @transform_5, window_bounds = array<i64: 16, 1>}, {transform_indices = @transform_6, window_bounds = array<i64: 2, 20, 256>}, {transform_indices = @transform_7, window_bounds = array<i64: 2, 16, 256>}]} {
    %c0 = arith.constant 0 : index
    %c0_0 = arith.constant 0 : index
    %0 = vector.load %arg3[%c0, %c0_0] : memref<16x8xf32, #tpu.memory_space<vmem>>, vector<16x8xf32>
    %c0_1 = arith.constant 0 : index
    %c0_2 = arith.constant 0 : index
    %1 = vector.load %arg4[%c0_1, %c0_2] : memref<16x1xf32, #tpu.memory_space<vmem>>, vector<16x1xf32>
    %cst = arith.constant 0.000000e+00 : f32
    %2 = vector.broadcast %cst : f32 to vector<24x24xf32>
    %c0_3 = arith.constant 0 : index
    %c0_4 = arith.constant 0 : index
    %3 = vector.load %arg9[%c0_3, %c0_4] : memref<24x304xf32, #tpu.memory_space<vmem>>, vector<24x24xf32>
    tpu.vector_store %arg9[%c0_3, %c0_4], %2 {strides = array<i32>} : memref<24x304xf32, #tpu.memory_space<vmem>>, vector<24x24xf32>,
    %cst_5 = arith.constant 0.000000e+00 : f32
    %4 = vector.broadcast %cst_5 : f32 to vector<24x24xf32>
    %c0_6 = arith.constant 0 : index
    %c280 = arith.constant 280 : index
    %5 = vector.load %arg9[%c0_6, %c280] : memref<24x304xf32, #tpu.memory_space<vmem>>, vector<24x24xf32>
    tpu.vector_store %arg9[%c0_6, %c280], %4 {strides = array<i32>} : memref<24x304xf32, #tpu.memory_space<vmem>>, vector<24x24xf32>,
    %cst_7 = arith.constant 0.000000e+00 : f32
    %6 = vector.broadcast %cst_7 : f32 to vector<4x304xf32>
    %c20 = arith.constant 20 : index
    %c0_8 = arith.constant 0 : index
    %7 = vector.load %arg9[%c20, %c0_8] : memref<24x304xf32, #tpu.memory_space<vmem>>, vector<4x304xf32>
    tpu.vector_store %arg9[%c20, %c0_8], %6 {strides = array<i32>} : memref<24x304xf32, #tpu.memory_space<vmem>>, vector<4x304xf32>,
    %8 = tpu.iota {dimensions = array<i32: 1>} : vector<24x256xi32>
    %c16_i32 = arith.constant 16 : i32
    %c0_i32 = arith.constant 0 : i32
    %9 = arith.cmpi eq, %c16_i32, %c0_i32 : i32
    %c1_i32 = arith.constant 1 : i32
    %10 = arith.select %9, %c1_i32, %c16_i32 : i32
    %11 = vector.broadcast %10 : i32 to vector<24x256xi32>
    %12 = arith.remsi %8, %11 : vector<24x256xi32>
    %c0_i32_9 = arith.constant 0 : i32
    %13 = vector.broadcast %c0_i32_9 : i32 to vector<24x256xi32>
    %14 = arith.cmpi ne, %12, %13 : vector<24x256xi32>
    %c0_i32_10 = arith.constant 0 : i32
    %15 = vector.broadcast %c0_i32_10 : i32 to vector<24x256xi32>
    %16 = arith.cmpi slt, %12, %15 : vector<24x256xi32>
    %c0_i32_11 = arith.constant 0 : i32
    %17 = arith.cmpi slt, %10, %c0_i32_11 : i32
    %18 = vector.broadcast %17 : i1 to vector<24x256xi1>
    %19 = vector.broadcast %18 : vector<24x256xi1> to vector<24x256xi1>
    %20 = arith.xori %16, %19 : vector<24x256xi1>
    %21 = arith.andi %20, %14 : vector<24x256xi1>
    %22 = vector.broadcast %10 : i32 to vector<24x256xi32>
    %23 = arith.addi %12, %22 : vector<24x256xi32>
    %24 = arith.select %21, %23, %12 : vector<24x256xi1>, vector<24x256xi32>
    %c1_i32_12 = arith.constant 1 : i32
    %25 = vector.broadcast %c1_i32_12 : i32 to vector<24x256xi32>
    %26 = arith.cmpi sge, %24, %25 : vector<24x256xi32>
    %c15_i32 = arith.constant 15 : i32
    %27 = vector.broadcast %c15_i32 : i32 to vector<24x256xi32>
    %28 = arith.cmpi slt, %24, %27 : vector<24x256xi32>
    %c0_13 = arith.constant 0 : index
    %c0_14 = arith.constant 0 : index
    %c0_15 = arith.constant 0 : index
    %29 = vector.load %arg5[%c0_13, %c0_14, %c0_15] : memref<9x16x24xf32, #tpu.memory_space<vmem>>, vector<1x16x24xf32>
    %30 = vector.shape_cast %29 : vector<1x16x24xf32> to vector<16x24xf32>
    %c1 = arith.constant 1 : index
    %c0_16 = arith.constant 0 : index
    %c0_17 = arith.constant 0 : index
    %31 = vector.load %arg5[%c1, %c0_16, %c0_17] : memref<9x16x24xf32, #tpu.memory_space<vmem>>, vector<1x16x24xf32>
    %32 = vector.shape_cast %31 : vector<1x16x24xf32> to vector<16x24xf32>
    %c2 = arith.constant 2 : index
    %c0_18 = arith.constant 0 : index
    %c0_19 = arith.constant 0 : index
    %33 = vector.load %arg5[%c2, %c0_18, %c0_19] : memref<9x16x24xf32, #tpu.memory_space<vmem>>, vector<1x16x24xf32>
    %34 = vector.shape_cast %33 : vector<1x16x24xf32> to vector<16x24xf32>
    %c3 = arith.constant 3 : index
    %c0_20 = arith.constant 0 : index
    %c0_21 = arith.constant 0 : index
    %35 = vector.load %arg5[%c3, %c0_20, %c0_21] : memref<9x16x24xf32, #tpu.memory_space<vmem>>, vector<1x16x24xf32>
    %36 = vector.shape_cast %35 : vector<1x16x24xf32> to vector<16x24xf32>
    %c4 = arith.constant 4 : index
    %c0_22 = arith.constant 0 : index
    %c0_23 = arith.constant 0 : index
    %37 = vector.load %arg5[%c4, %c0_22, %c0_23] : memref<9x16x24xf32, #tpu.memory_space<vmem>>, vector<1x16x24xf32>
    %38 = vector.shape_cast %37 : vector<1x16x24xf32> to vector<16x24xf32>
    %c5 = arith.constant 5 : index
    %c0_24 = arith.constant 0 : index
    %c0_25 = arith.constant 0 : index
    %39 = vector.load %arg5[%c5, %c0_24, %c0_25] : memref<9x16x24xf32, #tpu.memory_space<vmem>>, vector<1x16x24xf32>
    %40 = vector.shape_cast %39 : vector<1x16x24xf32> to vector<16x24xf32>
    %c6 = arith.constant 6 : index
    %c0_26 = arith.constant 0 : index
    %c0_27 = arith.constant 0 : index
    %41 = vector.load %arg5[%c6, %c0_26, %c0_27] : memref<9x16x24xf32, #tpu.memory_space<vmem>>, vector<1x16x24xf32>
    %42 = vector.shape_cast %41 : vector<1x16x24xf32> to vector<16x24xf32>
    %c7 = arith.constant 7 : index
    %c0_28 = arith.constant 0 : index
    %c0_29 = arith.constant 0 : index
    %43 = vector.load %arg5[%c7, %c0_28, %c0_29] : memref<9x16x24xf32, #tpu.memory_space<vmem>>, vector<1x16x24xf32>
    %44 = vector.shape_cast %43 : vector<1x16x24xf32> to vector<16x24xf32>
    %c8 = arith.constant 8 : index
    %c0_30 = arith.constant 0 : index
    %c0_31 = arith.constant 0 : index
    %45 = vector.load %arg5[%c8, %c0_30, %c0_31] : memref<9x16x24xf32, #tpu.memory_space<vmem>>, vector<1x16x24xf32>
    %46 = vector.shape_cast %45 : vector<1x16x24xf32> to vector<16x24xf32>
    %c0_32 = arith.constant 0 : index
    %c0_33 = arith.constant 0 : index
    %47 = vector.load %arg6[%c0_32, %c0_33] : memref<16x1xf32, #tpu.memory_space<vmem>>, vector<16x1xf32>
    %c0_34 = arith.constant 0 : index
    %c0_35 = arith.constant 0 : index
    %c0_36 = arith.constant 0 : index
    %48 = vector.load %arg1[%c0_34, %c0_35, %c0_36] : memref<2x8x256xf32, #tpu.memory_space<vmem>>, vector<1x8x256xf32>
    %49 = vector.shape_cast %48 : vector<1x8x256xf32> to vector<8x256xf32>
    %cst_37 = arith.constant dense<0.000000e+00> : vector<16x256xf32>
    %50 = tpu.matmul %0, %49, %cst_37 {dimension_numbers = #tpu.dot_dimension_numbers<[1], [0], [0], [1], [0, 0, 1, 1], [], []>} : vector<16x8xf32>, vector<8x256xf32>, vector<16x256xf32> -> vector<16x256xf32>
    %51 = vector.broadcast %1 : vector<16x1xf32> to vector<16x256xf32>
    %52 = arith.addf %50, %51 : vector<16x256xf32>
    %c0_38 = arith.constant 0 : index
    %c0_39 = arith.constant 0 : index
    %c0_40 = arith.constant 0 : index
    %53 = vector.load %arg2[%c0_38, %c0_39, %c0_40] : memref<2x4x256xf32, #tpu.memory_space<vmem>>, vector<1x4x256xf32>
    %54 = vector.shape_cast %53 : vector<1x4x256xf32> to vector<4x256xf32>
    %c0_41 = arith.constant 0 : index
    %c0_42 = arith.constant 0 : index
    %c0_43 = arith.constant 0 : index
    %55 = vector.load %arg7[%c0_41, %c0_42, %c0_43] : memref<2x20x256xf32, #tpu.memory_space<vmem>>, vector<1x16x256xf32>
    %56 = vector.shape_cast %55 : vector<1x16x256xf32> to vector<16x256xf32>
    %57 = vector.shape_cast %52 : vector<16x256xf32> to vector<1x16x256xf32>
    tpu.vector_store %arg7[%c0_41, %c0_42, %c0_43], %57 {strides = array<i32>} : memref<2x20x256xf32, #tpu.memory_space<vmem>>, vector<1x16x256xf32>,
    %c0_44 = arith.constant 0 : index
    %c16 = arith.constant 16 : index
    %c0_45 = arith.constant 0 : index
    %58 = vector.load %arg7[%c0_44, %c16, %c0_45] : memref<2x20x256xf32, #tpu.memory_space<vmem>>, vector<1x4x256xf32>
    %59 = vector.shape_cast %58 : vector<1x4x256xf32> to vector<4x256xf32>
    %60 = vector.shape_cast %54 : vector<4x256xf32> to vector<1x4x256xf32>
    tpu.vector_store %arg7[%c0_44, %c16, %c0_45], %60 {strides = array<i32>} : memref<2x20x256xf32, #tpu.memory_space<vmem>>, vector<1x4x256xf32>,
    %c0_46 = arith.constant 0 : index
    %c24 = arith.constant 24 : index
    %61 = vector.load %arg9[%c0_46, %c24] : memref<24x304xf32, #tpu.memory_space<vmem>>, vector<16x256xf32>
    tpu.vector_store %arg9[%c0_46, %c24], %52 {strides = array<i32>} : memref<24x304xf32, #tpu.memory_space<vmem>>, vector<16x256xf32>,
    %c16_47 = arith.constant 16 : index
    %c24_48 = arith.constant 24 : index
    %62 = vector.load %arg9[%c16_47, %c24_48] : memref<24x304xf32, #tpu.memory_space<vmem>>, vector<4x256xf32>
    tpu.vector_store %arg9[%c16_47, %c24_48], %54 {strides = array<i32>} : memref<24x304xf32, #tpu.memory_space<vmem>>, vector<4x256xf32>,
    %63 = vector.shape_cast %47 : vector<16x1xf32> to vector<16x1xf32>
    %64 = vector.broadcast %63 : vector<16x1xf32> to vector<16x256xf32>
    %c0_49 = arith.constant 0 : index
    %c7_50 = arith.constant 7 : index
    %65 = vector.load %arg9[%c0_49, %c7_50] : memref<24x304xf32, #tpu.memory_space<vmem>>, vector<24x256xf32>
    %cst_51 = arith.constant 0.000000e+00 : f32
    %66 = vector.broadcast %cst_51 : f32 to vector<24x256xf32>
    %67 = arith.select %26, %65, %66 : vector<24x256xi1>, vector<24x256xf32>
    %cst_52 = arith.constant dense<0.000000e+00> : vector<16x256xf32>
    %68 = tpu.matmul %30, %67, %cst_52 {dimension_numbers = #tpu.dot_dimension_numbers<[1], [0], [0], [1], [0, 0, 1, 1], [], []>} : vector<16x24xf32>, vector<24x256xf32>, vector<16x256xf32> -> vector<16x256xf32>
    %69 = arith.addf %64, %68 : vector<16x256xf32>
    %c0_53 = arith.constant 0 : index
    %c8_54 = arith.constant 8 : index
    %70 = vector.load %arg9[%c0_53, %c8_54] : memref<24x304xf32, #tpu.memory_space<vmem>>, vector<24x256xf32>
    %cst_55 = arith.constant dense<0.000000e+00> : vector<16x256xf32>
    %71 = tpu.matmul %32, %70, %cst_55 {dimension_numbers = #tpu.dot_dimension_numbers<[1], [0], [0], [1], [0, 0, 1, 1], [], []>} : vector<16x24xf32>, vector<24x256xf32>, vector<16x256xf32> -> vector<16x256xf32>
    %72 = arith.addf %69, %71 : vector<16x256xf32>
    %c0_56 = arith.constant 0 : index
    %c9 = arith.constant 9 : index
    %73 = vector.load %arg9[%c0_56, %c9] : memref<24x304xf32, #tpu.memory_space<vmem>>, vector<24x256xf32>
    %cst_57 = arith.constant 0.000000e+00 : f32
    %74 = vector.broadcast %cst_57 : f32 to vector<24x256xf32>
    %75 = arith.select %28, %73, %74 : vector<24x256xi1>, vector<24x256xf32>
    %cst_58 = arith.constant dense<0.000000e+00> : vector<16x256xf32>
    %76 = tpu.matmul %34, %75, %cst_58 {dimension_numbers = #tpu.dot_dimension_numbers<[1], [0], [0], [1], [0, 0, 1, 1], [], []>} : vector<16x24xf32>, vector<24x256xf32>, vector<16x256xf32> -> vector<16x256xf32>
    %77 = arith.addf %72, %76 : vector<16x256xf32>
    %c0_59 = arith.constant 0 : index
    %c23 = arith.constant 23 : index
    %78 = vector.load %arg9[%c0_59, %c23] : memref<24x304xf32, #tpu.memory_space<vmem>>, vector<24x256xf32>
    %cst_60 = arith.constant 0.000000e+00 : f32
    %79 = vector.broadcast %cst_60 : f32 to vector<24x256xf32>
    %80 = arith.select %26, %78, %79 : vector<24x256xi1>, vector<24x256xf32>
    %cst_61 = arith.constant dense<0.000000e+00> : vector<16x256xf32>
    %81 = tpu.matmul %36, %80, %cst_61 {dimension_numbers = #tpu.dot_dimension_numbers<[1], [0], [0], [1], [0, 0, 1, 1], [], []>} : vector<16x24xf32>, vector<24x256xf32>, vector<16x256xf32> -> vector<16x256xf32>
    %82 = arith.addf %77, %81 : vector<16x256xf32>
    %c0_62 = arith.constant 0 : index
    %c24_63 = arith.constant 24 : index
    %83 = vector.load %arg9[%c0_62, %c24_63] : memref<24x304xf32, #tpu.memory_space<vmem>>, vector<24x256xf32>
    %cst_64 = arith.constant dense<0.000000e+00> : vector<16x256xf32>
    %84 = tpu.matmul %38, %83, %cst_64 {dimension_numbers = #tpu.dot_dimension_numbers<[1], [0], [0], [1], [0, 0, 1, 1], [], []>} : vector<16x24xf32>, vector<24x256xf32>, vector<16x256xf32> -> vector<16x256xf32>
    %85 = arith.addf %82, %84 : vector<16x256xf32>
    %c0_65 = arith.constant 0 : index
    %c25 = arith.constant 25 : index
    %86 = vector.load %arg9[%c0_65, %c25] : memref<24x304xf32, #tpu.memory_space<vmem>>, vector<24x256xf32>
    %cst_66 = arith.constant 0.000000e+00 : f32
    %87 = vector.broadcast %cst_66 : f32 to vector<24x256xf32>
    %88 = arith.select %28, %86, %87 : vector<24x256xi1>, vector<24x256xf32>
    %cst_67 = arith.constant dense<0.000000e+00> : vector<16x256xf32>
    %89 = tpu.matmul %40, %88, %cst_67 {dimension_numbers = #tpu.dot_dimension_numbers<[1], [0], [0], [1], [0, 0, 1, 1], [], []>} : vector<16x24xf32>, vector<24x256xf32>, vector<16x256xf32> -> vector<16x256xf32>
    %90 = arith.addf %85, %89 : vector<16x256xf32>
    %c0_68 = arith.constant 0 : index
    %c39 = arith.constant 39 : index
    %91 = vector.load %arg9[%c0_68, %c39] : memref<24x304xf32, #tpu.memory_space<vmem>>, vector<24x256xf32>
    %cst_69 = arith.constant 0.000000e+00 : f32
    %92 = vector.broadcast %cst_69 : f32 to vector<24x256xf32>
    %93 = arith.select %26, %91, %92 : vector<24x256xi1>, vector<24x256xf32>
    %cst_70 = arith.constant dense<0.000000e+00> : vector<16x256xf32>
    %94 = tpu.matmul %42, %93, %cst_70 {dimension_numbers = #tpu.dot_dimension_numbers<[1], [0], [0], [1], [0, 0, 1, 1], [], []>} : vector<16x24xf32>, vector<24x256xf32>, vector<16x256xf32> -> vector<16x256xf32>
    %95 = arith.addf %90, %94 : vector<16x256xf32>
    %c0_71 = arith.constant 0 : index
    %c40 = arith.constant 40 : index
    %96 = vector.load %arg9[%c0_71, %c40] : memref<24x304xf32, #tpu.memory_space<vmem>>, vector<24x256xf32>
    %cst_72 = arith.constant dense<0.000000e+00> : vector<16x256xf32>
    %97 = tpu.matmul %44, %96, %cst_72 {dimension_numbers = #tpu.dot_dimension_numbers<[1], [0], [0], [1], [0, 0, 1, 1], [], []>} : vector<16x24xf32>, vector<24x256xf32>, vector<16x256xf32> -> vector<16x256xf32>
    %98 = arith.addf %95, %97 : vector<16x256xf32>
    %c0_73 = arith.constant 0 : index
    %c41 = arith.constant 41 : index
    %99 = vector.load %arg9[%c0_73, %c41] : memref<24x304xf32, #tpu.memory_space<vmem>>, vector<24x256xf32>
    %cst_74 = arith.constant 0.000000e+00 : f32
    %100 = vector.broadcast %cst_74 : f32 to vector<24x256xf32>
    %101 = arith.select %28, %99, %100 : vector<24x256xi1>, vector<24x256xf32>
    %cst_75 = arith.constant dense<0.000000e+00> : vector<16x256xf32>
    %102 = tpu.matmul %46, %101, %cst_75 {dimension_numbers = #tpu.dot_dimension_numbers<[1], [0], [0], [1], [0, 0, 1, 1], [], []>} : vector<16x24xf32>, vector<24x256xf32>, vector<16x256xf32> -> vector<16x256xf32>
    %103 = arith.addf %98, %102 : vector<16x256xf32>
    %c0_76 = arith.constant 0 : index
    %c0_77 = arith.constant 0 : index
    %c0_78 = arith.constant 0 : index
    %104 = vector.load %arg8[%c0_76, %c0_77, %c0_78] : memref<2x16x256xf32, #tpu.memory_space<vmem>>, vector<1x16x256xf32>
    %105 = vector.shape_cast %104 : vector<1x16x256xf32> to vector<16x256xf32>
    %106 = vector.shape_cast %103 : vector<16x256xf32> to vector<1x16x256xf32>
    tpu.vector_store %arg8[%c0_76, %c0_77, %c0_78], %106 {strides = array<i32>} : memref<2x16x256xf32, #tpu.memory_space<vmem>>, vector<1x16x256xf32>,
    %c1_79 = arith.constant 1 : index
    %c0_80 = arith.constant 0 : index
    %c0_81 = arith.constant 0 : index
    %107 = vector.load %arg1[%c1_79, %c0_80, %c0_81] : memref<2x8x256xf32, #tpu.memory_space<vmem>>, vector<1x8x256xf32>
    %108 = vector.shape_cast %107 : vector<1x8x256xf32> to vector<8x256xf32>
    %cst_82 = arith.constant dense<0.000000e+00> : vector<16x256xf32>
    %109 = tpu.matmul %0, %108, %cst_82 {dimension_numbers = #tpu.dot_dimension_numbers<[1], [0], [0], [1], [0, 0, 1, 1], [], []>} : vector<16x8xf32>, vector<8x256xf32>, vector<16x256xf32> -> vector<16x256xf32>
    %110 = vector.broadcast %1 : vector<16x1xf32> to vector<16x256xf32>
    %111 = arith.addf %109, %110 : vector<16x256xf32>
    %c1_83 = arith.constant 1 : index
    %c0_84 = arith.constant 0 : index
    %c0_85 = arith.constant 0 : index
    %112 = vector.load %arg2[%c1_83, %c0_84, %c0_85] : memref<2x4x256xf32, #tpu.memory_space<vmem>>, vector<1x4x256xf32>
    %113 = vector.shape_cast %112 : vector<1x4x256xf32> to vector<4x256xf32>
    %c1_86 = arith.constant 1 : index
    %c0_87 = arith.constant 0 : index
    %c0_88 = arith.constant 0 : index
    %114 = vector.load %arg7[%c1_86, %c0_87, %c0_88] : memref<2x20x256xf32, #tpu.memory_space<vmem>>, vector<1x16x256xf32>
    %115 = vector.shape_cast %114 : vector<1x16x256xf32> to vector<16x256xf32>
    %116 = vector.shape_cast %111 : vector<16x256xf32> to vector<1x16x256xf32>
    tpu.vector_store %arg7[%c1_86, %c0_87, %c0_88], %116 {strides = array<i32>} : memref<2x20x256xf32, #tpu.memory_space<vmem>>, vector<1x16x256xf32>,
    %c1_89 = arith.constant 1 : index
    %c16_90 = arith.constant 16 : index
    %c0_91 = arith.constant 0 : index
    %117 = vector.load %arg7[%c1_89, %c16_90, %c0_91] : memref<2x20x256xf32, #tpu.memory_space<vmem>>, vector<1x4x256xf32>
    %118 = vector.shape_cast %117 : vector<1x4x256xf32> to vector<4x256xf32>
    %119 = vector.shape_cast %113 : vector<4x256xf32> to vector<1x4x256xf32>
    tpu.vector_store %arg7[%c1_89, %c16_90, %c0_91], %119 {strides = array<i32>} : memref<2x20x256xf32, #tpu.memory_space<vmem>>, vector<1x4x256xf32>,
    %c0_92 = arith.constant 0 : index
    %c24_93 = arith.constant 24 : index
    %120 = vector.load %arg9[%c0_92, %c24_93] : memref<24x304xf32, #tpu.memory_space<vmem>>, vector<16x256xf32>
    tpu.vector_store %arg9[%c0_92, %c24_93], %111 {strides = array<i32>} : memref<24x304xf32, #tpu.memory_space<vmem>>, vector<16x256xf32>,
    %c16_94 = arith.constant 16 : index
    %c24_95 = arith.constant 24 : index
    %121 = vector.load %arg9[%c16_94, %c24_95] : memref<24x304xf32, #tpu.memory_space<vmem>>, vector<4x256xf32>
    tpu.vector_store %arg9[%c16_94, %c24_95], %113 {strides = array<i32>} : memref<24x304xf32, #tpu.memory_space<vmem>>, vector<4x256xf32>,
    %122 = vector.shape_cast %47 : vector<16x1xf32> to vector<16x1xf32>
    %123 = vector.broadcast %122 : vector<16x1xf32> to vector<16x256xf32>
    %c0_96 = arith.constant 0 : index
    %c7_97 = arith.constant 7 : index
    %124 = vector.load %arg9[%c0_96, %c7_97] : memref<24x304xf32, #tpu.memory_space<vmem>>, vector<24x256xf32>
    %cst_98 = arith.constant 0.000000e+00 : f32
    %125 = vector.broadcast %cst_98 : f32 to vector<24x256xf32>
    %126 = arith.select %26, %124, %125 : vector<24x256xi1>, vector<24x256xf32>
    %cst_99 = arith.constant dense<0.000000e+00> : vector<16x256xf32>
    %127 = tpu.matmul %30, %126, %cst_99 {dimension_numbers = #tpu.dot_dimension_numbers<[1], [0], [0], [1], [0, 0, 1, 1], [], []>} : vector<16x24xf32>, vector<24x256xf32>, vector<16x256xf32> -> vector<16x256xf32>
    %128 = arith.addf %123, %127 : vector<16x256xf32>
    %c0_100 = arith.constant 0 : index
    %c8_101 = arith.constant 8 : index
    %129 = vector.load %arg9[%c0_100, %c8_101] : memref<24x304xf32, #tpu.memory_space<vmem>>, vector<24x256xf32>
    %cst_102 = arith.constant dense<0.000000e+00> : vector<16x256xf32>
    %130 = tpu.matmul %32, %129, %cst_102 {dimension_numbers = #tpu.dot_dimension_numbers<[1], [0], [0], [1], [0, 0, 1, 1], [], []>} : vector<16x24xf32>, vector<24x256xf32>, vector<16x256xf32> -> vector<16x256xf32>
    %131 = arith.addf %128, %130 : vector<16x256xf32>
    %c0_103 = arith.constant 0 : index
    %c9_104 = arith.constant 9 : index
    %132 = vector.load %arg9[%c0_103, %c9_104] : memref<24x304xf32, #tpu.memory_space<vmem>>, vector<24x256xf32>
    %cst_105 = arith.constant 0.000000e+00 : f32
    %133 = vector.broadcast %cst_105 : f32 to vector<24x256xf32>
    %134 = arith.select %28, %132, %133 : vector<24x256xi1>, vector<24x256xf32>
    %cst_106 = arith.constant dense<0.000000e+00> : vector<16x256xf32>
    %135 = tpu.matmul %34, %134, %cst_106 {dimension_numbers = #tpu.dot_dimension_numbers<[1], [0], [0], [1], [0, 0, 1, 1], [], []>} : vector<16x24xf32>, vector<24x256xf32>, vector<16x256xf32> -> vector<16x256xf32>
    %136 = arith.addf %131, %135 : vector<16x256xf32>
    %c0_107 = arith.constant 0 : index
    %c23_108 = arith.constant 23 : index
    %137 = vector.load %arg9[%c0_107, %c23_108] : memref<24x304xf32, #tpu.memory_space<vmem>>, vector<24x256xf32>
    %cst_109 = arith.constant 0.000000e+00 : f32
    %138 = vector.broadcast %cst_109 : f32 to vector<24x256xf32>
    %139 = arith.select %26, %137, %138 : vector<24x256xi1>, vector<24x256xf32>
    %cst_110 = arith.constant dense<0.000000e+00> : vector<16x256xf32>
    %140 = tpu.matmul %36, %139, %cst_110 {dimension_numbers = #tpu.dot_dimension_numbers<[1], [0], [0], [1], [0, 0, 1, 1], [], []>} : vector<16x24xf32>, vector<24x256xf32>, vector<16x256xf32> -> vector<16x256xf32>
    %141 = arith.addf %136, %140 : vector<16x256xf32>
    %c0_111 = arith.constant 0 : index
    %c24_112 = arith.constant 24 : index
    %142 = vector.load %arg9[%c0_111, %c24_112] : memref<24x304xf32, #tpu.memory_space<vmem>>, vector<24x256xf32>
    %cst_113 = arith.constant dense<0.000000e+00> : vector<16x256xf32>
    %143 = tpu.matmul %38, %142, %cst_113 {dimension_numbers = #tpu.dot_dimension_numbers<[1], [0], [0], [1], [0, 0, 1, 1], [], []>} : vector<16x24xf32>, vector<24x256xf32>, vector<16x256xf32> -> vector<16x256xf32>
    %144 = arith.addf %141, %143 : vector<16x256xf32>
    %c0_114 = arith.constant 0 : index
    %c25_115 = arith.constant 25 : index
    %145 = vector.load %arg9[%c0_114, %c25_115] : memref<24x304xf32, #tpu.memory_space<vmem>>, vector<24x256xf32>
    %cst_116 = arith.constant 0.000000e+00 : f32
    %146 = vector.broadcast %cst_116 : f32 to vector<24x256xf32>
    %147 = arith.select %28, %145, %146 : vector<24x256xi1>, vector<24x256xf32>
    %cst_117 = arith.constant dense<0.000000e+00> : vector<16x256xf32>
    %148 = tpu.matmul %40, %147, %cst_117 {dimension_numbers = #tpu.dot_dimension_numbers<[1], [0], [0], [1], [0, 0, 1, 1], [], []>} : vector<16x24xf32>, vector<24x256xf32>, vector<16x256xf32> -> vector<16x256xf32>
    %149 = arith.addf %144, %148 : vector<16x256xf32>
    %c0_118 = arith.constant 0 : index
    %c39_119 = arith.constant 39 : index
    %150 = vector.load %arg9[%c0_118, %c39_119] : memref<24x304xf32, #tpu.memory_space<vmem>>, vector<24x256xf32>
    %cst_120 = arith.constant 0.000000e+00 : f32
    %151 = vector.broadcast %cst_120 : f32 to vector<24x256xf32>
    %152 = arith.select %26, %150, %151 : vector<24x256xi1>, vector<24x256xf32>
    %cst_121 = arith.constant dense<0.000000e+00> : vector<16x256xf32>
    %153 = tpu.matmul %42, %152, %cst_121 {dimension_numbers = #tpu.dot_dimension_numbers<[1], [0], [0], [1], [0, 0, 1, 1], [], []>} : vector<16x24xf32>, vector<24x256xf32>, vector<16x256xf32> -> vector<16x256xf32>
    %154 = arith.addf %149, %153 : vector<16x256xf32>
    %c0_122 = arith.constant 0 : index
    %c40_123 = arith.constant 40 : index
    %155 = vector.load %arg9[%c0_122, %c40_123] : memref<24x304xf32, #tpu.memory_space<vmem>>, vector<24x256xf32>
    %cst_124 = arith.constant dense<0.000000e+00> : vector<16x256xf32>
    %156 = tpu.matmul %44, %155, %cst_124 {dimension_numbers = #tpu.dot_dimension_numbers<[1], [0], [0], [1], [0, 0, 1, 1], [], []>} : vector<16x24xf32>, vector<24x256xf32>, vector<16x256xf32> -> vector<16x256xf32>
    %157 = arith.addf %154, %156 : vector<16x256xf32>
    %c0_125 = arith.constant 0 : index
    %c41_126 = arith.constant 41 : index
    %158 = vector.load %arg9[%c0_125, %c41_126] : memref<24x304xf32, #tpu.memory_space<vmem>>, vector<24x256xf32>
    %cst_127 = arith.constant 0.000000e+00 : f32
    %159 = vector.broadcast %cst_127 : f32 to vector<24x256xf32>
    %160 = arith.select %28, %158, %159 : vector<24x256xi1>, vector<24x256xf32>
    %cst_128 = arith.constant dense<0.000000e+00> : vector<16x256xf32>
    %161 = tpu.matmul %46, %160, %cst_128 {dimension_numbers = #tpu.dot_dimension_numbers<[1], [0], [0], [1], [0, 0, 1, 1], [], []>} : vector<16x24xf32>, vector<24x256xf32>, vector<16x256xf32> -> vector<16x256xf32>
    %162 = arith.addf %157, %161 : vector<16x256xf32>
    %c1_129 = arith.constant 1 : index
    %c0_130 = arith.constant 0 : index
    %c0_131 = arith.constant 0 : index
    %163 = vector.load %arg8[%c1_129, %c0_130, %c0_131] : memref<2x16x256xf32, #tpu.memory_space<vmem>>, vector<1x16x256xf32>
    %164 = vector.shape_cast %163 : vector<1x16x256xf32> to vector<16x256xf32>
    %165 = vector.shape_cast %162 : vector<16x256xf32> to vector<1x16x256xf32>
    tpu.vector_store %arg8[%c1_129, %c0_130, %c0_131], %165 {strides = array<i32>} : memref<2x16x256xf32, #tpu.memory_space<vmem>>, vector<1x16x256xf32>,
    return
  }
  func.func @transform_0(%arg0: i32) -> (i32, i32, i32) {
    %c0_i32 = arith.constant 0 : i32
    %c0_i32_0 = arith.constant 0 : i32
    %c0_i32_1 = arith.constant 0 : i32
    return %arg0, %c0_i32, %c0_i32_0 : i32, i32, i32
  }
  func.func @transform_1(%arg0: i32) -> (i32, i32, i32) {
    %c0_i32 = arith.constant 0 : i32
    %c0_i32_0 = arith.constant 0 : i32
    %c0_i32_1 = arith.constant 0 : i32
    return %arg0, %c0_i32, %c0_i32_0 : i32, i32, i32
  }
  func.func @transform_2(%arg0: i32) -> (i32, i32) {
    %c0_i32 = arith.constant 0 : i32
    %c0_i32_0 = arith.constant 0 : i32
    %c0_i32_1 = arith.constant 0 : i32
    return %c0_i32, %c0_i32_0 : i32, i32
  }
  func.func @transform_3(%arg0: i32) -> (i32, i32) {
    %c0_i32 = arith.constant 0 : i32
    %c0_i32_0 = arith.constant 0 : i32
    %c0_i32_1 = arith.constant 0 : i32
    return %c0_i32, %c0_i32_0 : i32, i32
  }
  func.func @transform_4(%arg0: i32) -> (i32, i32, i32) {
    %c0_i32 = arith.constant 0 : i32
    %c0_i32_0 = arith.constant 0 : i32
    %c0_i32_1 = arith.constant 0 : i32
    %c0_i32_2 = arith.constant 0 : i32
    return %c0_i32, %c0_i32_0, %c0_i32_1 : i32, i32, i32
  }
  func.func @transform_5(%arg0: i32) -> (i32, i32) {
    %c0_i32 = arith.constant 0 : i32
    %c0_i32_0 = arith.constant 0 : i32
    %c0_i32_1 = arith.constant 0 : i32
    return %c0_i32, %c0_i32_0 : i32, i32
  }
  func.func @transform_6(%arg0: i32) -> (i32, i32, i32) {
    %c0_i32 = arith.constant 0 : i32
    %c0_i32_0 = arith.constant 0 : i32
    %c0_i32_1 = arith.constant 0 : i32
    return %arg0, %c0_i32, %c0_i32_0 : i32, i32, i32
  }
  func.func @transform_7(%arg0: i32) -> (i32, i32, i32) {
    %c0_i32 = arith.constant 0 : i32
    %c0_i32_0 = arith.constant 0 : i32
    %c0_i32_1 = arith.constant 0 : i32
    return %arg0, %c0_i32, %c0_i32_0 : i32, i32, i32
  }
}

</mosaic_0001>

<llo_original>
// kernel: _fused_neck.1
$region0: #{_fused_neck.1}
  #allocation0 [shape = 'u32[]', space=smem, size = 0x4, offset = 0x4, fixed_abs, tag = 'smem constant byte address 0x4 - core index']
  #allocation1 [shape = 'u32[144,128]{1,0:T(1,128)}', space=vmem, size = 0x12000, scoped, tag = 'internal scratch']
  #allocation2 [shape = 'f32[24,304]{1,0:T(8,128)}', space=vmem, size = 0x9000, scoped, tag = 'scratch operand']
  %s0 = inlined_call_operand.vmem [shape: f32[2,8,256], index: 0, kind: input, shape index: {}]
  %s1 = inlined_call_operand.vmem [shape: f32[2,4,256], index: 1, kind: input, shape index: {}]
  %s2 = inlined_call_operand.vmem [shape: f32[16,8], index: 2, kind: input, shape index: {}]
  %s3 = inlined_call_operand.vmem [shape: f32[16,1], index: 3, kind: input, shape index: {}]
  %s4 = inlined_call_operand.vmem [shape: f32[9,16,24], index: 4, kind: input, shape index: {}]
  %s5 = inlined_call_operand.vmem [shape: f32[16,1], index: 5, kind: input, shape index: {}]
  %s6 = inlined_call_operand.vmem [shape: f32[2,20,256], index: 6, kind: output, shape index: {0}]
  %s7 = inlined_call_operand.vmem [shape: f32[2,16,256], index: 7, kind: output, shape index: {1}]
  %8 = xla_tuple %s6, %s7
  %s9 = sld [smem:[#allocation0]]
  $region42: #{_fused_neck.1} parent=0
    _
  %s11 = ssub.s32 1, %s9
  %s12 = scalar_select 0, %s11, %s9
  // Predicated region
  $region2: #{_fused_neck.1} parent=0 // pred_check
    _
  $region3: #{_fused_neck.1} parent=0 // pred_check_branch
    %14 = sbr.rel (0) target = $region5
  $region4: #{_fused_neck.1} parent=0 // pred_region
    _
  $region5: #{_fused_neck.1} parent=0 // pred_fallthru
    _
  // Predicated region
  $region6: #{_fused_neck.1} parent=0 // pred_check
    _
  $region7: #{_fused_neck.1} parent=0 // pred_check_branch
    %16 = sbr.rel (0) target = $region9
  $region8: #{_fused_neck.1} parent=0 // pred_region
    _
  $region9: #{_fused_neck.1} parent=0 // pred_fallthru
    _
  // Predicated region
  $region10: #{_fused_neck.1} parent=0 // pred_check
    _
  $region11: #{_fused_neck.1} parent=0 // pred_check_branch
    %18 = sbr.rel (0) target = $region13
  $region12: #{_fused_neck.1} parent=0 // pred_region
    _
  $region13: #{_fused_neck.1} parent=0 // pred_fallthru
    _
  // Predicated region
  $region14: #{_fused_neck.1} parent=0 // pred_check
    _
  $region15: #{_fused_neck.1} parent=0 // pred_check_branch
    %20 = sbr.rel (0) target = $region17
  $region16: #{_fused_neck.1} parent=0 // pred_region
    _
  $region17: #{_fused_neck.1} parent=0 // pred_fallthru
    _
  // Predicated region
  $region18: #{_fused_neck.1} parent=0 // pred_check
    _
  $region19: #{_fused_neck.1} parent=0 // pred_check_branch
    %22 = sbr.rel (0) target = $region21
  $region20: #{_fused_neck.1} parent=0 // pred_region
    _
  $region21: #{_fused_neck.1} parent=0 // pred_fallthru
    _
  // Predicated region
  $region22: #{_fused_neck.1} parent=0 // pred_check
    _
  $region23: #{_fused_neck.1} parent=0 // pred_check_branch
    %24 = sbr.rel (0) target = $region25
  $region24: #{_fused_neck.1} parent=0 // pred_region
    _
  $region25: #{_fused_neck.1} parent=0 // pred_fallthru
    _
  %v25 = vld [vmem:[%s2] sm:$0xff]
  %v26 = vld [vmem:[%s2 + $0x8] sm:$0xff]
  %v27 = vld [vmem:[%s3] sm:$0xff]
  %v28 = vld [vmem:[%s3 + $0x8] sm:$0xff]
  %vm29 = vcmask 195584
  %30 = vst.msk [vmem:[#allocation2] sm:$0xff] %vm29, 0.0
  %31 = vst.msk [vmem:[#allocation2 + $0x18] sm:$0xff] %vm29, 0.0
  %32 = vst.msk [vmem:[#allocation2 + $0x30] sm:$0xff] %vm29, 0.0
  %vm33 = vcmask 392384
  %34 = vst.msk [vmem:[#allocation2 + $0x10] sm:$0xff] %vm33, 0.0
  %35 = vst.msk [vmem:[#allocation2 + $0x28] sm:$0xff] %vm33, 0.0
  %36 = vst.msk [vmem:[#allocation2 + $0x40] sm:$0xff] %vm33, 0.0
  %37 = vst [vmem:[#allocation2 + $0x30] sm:$0xf0] 0.0
  %38 = vst [vmem:[#allocation2 + $0x38] sm:$0xf0] 0.0
  %vm39 = vcmask 392196
  %40 = vst.msk [vmem:[#allocation2 + $0x40] sm:$0xf0] %vm39, 0.0
  %v41 = vlaneseq
  %v42 = vand.u32 %v41, 127
  %v43 = vadd.s32 %v42, 128
  %vm44 = vcmp.lt.s32.totalorder %v42, 0
  %v45 = vsub.s32 0, %v42
  %v46 = vsel %vm44, %v45, %v42
  %v47 = vshrl.u32 %v46, 4
  %v48 = vand.u32 %v46, 15
  %v49 = vsub.s32 0, %v48
  %v50 = vsel %vm44, %v49, %v48
  %vm51 = vcmp.lt.s32.totalorder %v43, 0
  %v52 = vsub.s32 0, %v43
  %v53 = vsel %vm51, %v52, %v43
  %v54 = vshrl.u32 %v53, 4
  %v55 = vand.u32 %v53, 15
  %v56 = vsub.s32 0, %v55
  %v57 = vsel %vm51, %v56, %v55
  %vm58 = vcmp.ne.s32.totalorder %v50, 0
  %vm59 = vcmp.ne.s32.totalorder %v57, 0
  %vm60 = vcmp.lt.s32.totalorder %v50, 0
  %vm61 = vcmp.lt.s32.totalorder %v57, 0
  %vm62 = vmand %vm60, %vm58
  %vm63 = vmand %vm61, %vm59
  %v64 = vadd.s32 %v50, 16
  %v65 = vadd.s32 %v57, 16
  %v66 = vsel %vm62, %v64, %v50
  %v67 = vsel %vm63, %v65, %v57
  %vm68 = vcmp.ge.s32.totalorder %v66, 1
  %vm69 = vcmp.ge.s32.totalorder %v67, 1
  %vm70 = vcmp.lt.s32.totalorder %v66, 15
  %vm71 = vcmp.lt.s32.totalorder %v67, 15
  %v72 = vld [vmem:[%s4] sm:$0xff]
  %v73 = vld [vmem:[%s4 + $0x8] sm:$0xff]
  %s74 = scalar_lea.vmem %s4, 16
  %v75 = vld [vmem:[%s74] sm:$0xff]
  %v76 = vld [vmem:[%s74 + $0x8] sm:$0xff]
  %s77 = scalar_lea.vmem %s4, 32
  %v78 = vld [vmem:[%s77] sm:$0xff]
  %v79 = vld [vmem:[%s77 + $0x8] sm:$0xff]
  %s80 = scalar_lea.vmem %s4, 48
  %v81 = vld [vmem:[%s80] sm:$0xff]
  %v82 = vld [vmem:[%s80 + $0x8] sm:$0xff]
  %s83 = scalar_lea.vmem %s4, 64
  %v84 = vld [vmem:[%s83] sm:$0xff]
  %v85 = vld [vmem:[%s83 + $0x8] sm:$0xff]
  %s86 = scalar_lea.vmem %s4, 80
  %v87 = vld [vmem:[%s86] sm:$0xff]
  %v88 = vld [vmem:[%s86 + $0x8] sm:$0xff]
  %s89 = scalar_lea.vmem %s4, 96
  %v90 = vld [vmem:[%s89] sm:$0xff]
  %v91 = vld [vmem:[%s89 + $0x8] sm:$0xff]
  %s92 = scalar_lea.vmem %s4, 112
  %v93 = vld [vmem:[%s92] sm:$0xff]
  %v94 = vld [vmem:[%s92 + $0x8] sm:$0xff]
  %s95 = scalar_lea.vmem %s4, 128
  %v96 = vld [vmem:[%s95] sm:$0xff]
  %v97 = vld [vmem:[%s95 + $0x8] sm:$0xff]
  %v98 = vld [vmem:[%s5] sm:$0xff]
  %v99 = vld [vmem:[%s5 + $0x8] sm:$0xff]
  %v100 = vld [vmem:[%s0] sm:$0xff]
  %v101 = vld [vmem:[%s0 + $0x8] sm:$0xff]
  %103 = vset.pattern.permute.xlu0 0
  %104 = vperm.xlu0 %103, %v27
  %v105 = vpop.permute.xlu0 %104
  %108 = vset.pattern.permute.xlu0 0
  %109 = vperm.xlu0 %108, %v28
  %v110 = vpop.permute.xlu0 %109
  %vm112 = vcmask 64512
  %v114 = vsel %vm112, %v25, 0
  %v117 = vsel %vm112, %v26, 0
  %119 = vmatprep.subr.mxu0 %v101
  %120 = vmatpush1.msra.mxu0 %v100
  %121 = vmatprep.subr.mxu0 0.0
  %122 = vmatpush1.msra.mxu0 0.0
  %123 = vmatprep.subr.mxu0 0.0
  %124 = vmatpush1.msra.mxu0 0.0
  %125 = vmatprep.subr.mxu0 0.0
  %126 = vmatpush1.msra.mxu0 0.0
  %127 = vmatprep.subr.mxu0 0.0
  %128 = vmatpush1.msra.mxu0 0.0
  %129 = vmatprep.subr.mxu0 0.0
  %130 = vmatpush1.msra.mxu0 0.0
  %131 = vmatprep.subr.mxu0 0.0
  %132 = vmatpush1.msra.mxu0 0.0
  %133 = vmatprep.subr.mxu0 0.0
  %134 = vmatpush1.msra.mxu0 0.0
  %135 = vmatprep.subr.mxu0 0.0
  %136 = vmatpush1.msra.mxu0 0.0
  %137 = vmatprep.subr.mxu0 0.0
  %138 = vmatpush1.msra.mxu0 0.0
  %139 = vmatprep.subr.mxu0 0.0
  %140 = vmatpush1.msra.mxu0 0.0
  %141 = vmatprep.subr.mxu0 0.0
  %142 = vmatpush1.msra.mxu0 0.0
  %143 = vmatprep.subr.mxu0 0.0
  %144 = vmatpush1.msra.mxu0 0.0
  %145 = vmatprep.subr.mxu0 0.0
  %146 = vmatpush1.msra.mxu0 0.0
  %147 = vmatprep.subr.mxu0 0.0
  %148 = vmatpush1.msra.mxu0 0.0
  %149 = vmatprep.subr.mxu0 0.0
  %150 = vmatpush1.msra.mxu0 0.0
  %151 = vmatprep.subr.mxu0 0.0
  %152 = vmatpush1.msra.mxu0 0.0
  %153 = vmatprep.subr.mxu0 0.0
  %154 = vmatpush1.msra.mxu0 0.0
  %155 = vmatprep.subr.mxu0 0.0
  %156 = vmatpush1.msra.mxu0 0.0
  %157 = vmatprep.subr.mxu0 0.0
  %158 = vmatpush1.msra.mxu0 0.0
  %159 = vmatprep.subr.mxu0 0.0
  %160 = vmatpush1.msra.mxu0 0.0
  %161 = vmatprep.subr.mxu0 0.0
  %162 = vmatpush1.msra.mxu0 0.0
  %163 = vmatprep.subr.mxu0 0.0
  %164 = vmatpush1.msra.mxu0 0.0
  %165 = vmatprep.subr.mxu0 0.0
  %166 = vmatpush1.msra.mxu0 0.0
  %167 = vmatprep.subr.mxu0 0.0
  %168 = vmatpush1.msra.mxu0 0.0
  %169 = vmatprep.subr.mxu0 0.0
  %170 = vmatpush1.msra.mxu0 0.0
  %171 = vmatprep.subr.mxu0 0.0
  %172 = vmatpush1.msra.mxu0 0.0
  %173 = vmatprep.subr.mxu0 0.0
  %174 = vmatpush1.msra.mxu0 0.0
  %175 = vmatprep.subr.mxu0 0.0
  %176 = vmatpush1.msra.mxu0 0.0
  %177 = vmatprep.subr.mxu0 0.0
  %178 = vmatpush1.msra.mxu0 0.0
  %179 = vmatprep.subr.mxu0 0.0
  %180 = vmatpush1.msra.mxu0 0.0
  %181 = vmatprep.subr.mxu0 0.0
  %182 = vmatpush1.msra.mxu0 0.0
  %183 = vmatprep.mubr.f32.mxu0 0.0
  %184 = vmatmul.mubr.f32.gmra.mrb[0].mxu0 %v114
  %v185 = vpop.f32.mrb[0].mxu0
  %v186 = vadd.f32 %v105, %v185
  %v187 = vpop.f32.mrb[0].mxu0
  %v188 = vadd.f32 %v105, %v187
  %189 = vmatprep.mubr.f32.mxu0 0.0
  %190 = vmatmul.mubr.f32.gmra.mrb[0].mxu0 %v117
  %v191 = vpop.f32.mrb[0].mxu0
  %v192 = vadd.f32 %v110, %v191
  %v193 = vpop.f32.mrb[0].mxu0
  %v194 = vadd.f32 %v110, %v193
  %195 = vdwg.mxu0
  %v196 = vld [vmem:[%s1] sm:$0xff]
  %197 = vst [vmem:[%s6] sm:$0xff] %v186
  %198 = vst [vmem:[%s6 + $0x8] sm:$0xff] %v188
  %199 = vst [vmem:[%s6 + $0x10] sm:$0xff] %v192
  %200 = vst [vmem:[%s6 + $0x18] sm:$0xff] %v194
  %v202 = vcombine.high %v196, %v196
  %204 = vst [vmem:[%s6 + $0x20] sm:$0xf] %v196
  %205 = vst [vmem:[%s6 + $0x28] sm:$0xf] %v202
  %210 = vrot.lane.b32.xlu0 %v186, 24
  %v211 = vpop.permute.xlu0 %210
  %212 = vrot.lane.b32.xlu0 %v188, 24
  %v213 = vpop.permute.xlu0 %212
  %214 = vrot.lane.b32.xlu0 %v192, 24
  %v215 = vpop.permute.xlu0 %214
  %216 = vrot.lane.b32.xlu0 %v194, 24
  %v217 = vpop.permute.xlu0 %216
  %v218 = vsel %vm29, %v211, %v213
  %v219 = vsel %vm29, %v215, %v217
  %vm226 = vcmask 1047744
  %227 = vst.msk [vmem:[#allocation2] sm:$0xff] %vm226, %v211
  %228 = vst [vmem:[#allocation2 + $0x8] sm:$0xff] %v218
  %229 = vst.msk [vmem:[#allocation2 + $0x10] sm:$0xff] %vm29, %v213
  %230 = vst.msk [vmem:[#allocation2 + $0x18] sm:$0xff] %vm226, %v215
  %231 = vst [vmem:[#allocation2 + $0x20] sm:$0xff] %v219
  %232 = vst.msk [vmem:[#allocation2 + $0x28] sm:$0xff] %vm29, %v217
  %233 = vrot.lane.b32.xlu0 %v196, 24
  %v234 = vpop.permute.xlu0 %233
  %235 = vrot.lane.b32.xlu0 %v202, 24
  %v236 = vpop.permute.xlu0 %235
  %v237 = vsel %vm29, %v234, %v236
  %vm241 = vcmask 1043648
  %242 = vst.msk [vmem:[#allocation2 + $0x30] sm:$0xf] %vm241, %v234
  %243 = vst [vmem:[#allocation2 + $0x38] sm:$0xf] %v237
  %vm244 = vcmask 191488
  %245 = vst.msk [vmem:[#allocation2 + $0x40] sm:$0xf] %vm244, %v236
  %247 = vset.pattern.permute.xlu0 0
  %248 = vperm.xlu0 %247, %v98
  %v249 = vpop.permute.xlu0 %248
  %252 = vset.pattern.permute.xlu0 0
  %253 = vperm.xlu0 %252, %v99
  %v254 = vpop.permute.xlu0 %253
  %v256 = vld [vmem:[#allocation2] sm:$0xff]
  %v257 = vld [vmem:[#allocation2 + $0x8] sm:$0xff]
  %v258 = vld [vmem:[#allocation2 + $0x10] sm:$0xff]
  %v259 = vld [vmem:[#allocation2 + $0x18] sm:$0xff]
  %v260 = vld [vmem:[#allocation2 + $0x20] sm:$0xff]
  %v261 = vld [vmem:[#allocation2 + $0x28] sm:$0xff]
  %v262 = vld [vmem:[#allocation2 + $0x30] sm:$0xff]
  %v263 = vld [vmem:[#allocation2 + $0x38] sm:$0xff]
  %v264 = vld [vmem:[#allocation2 + $0x40] sm:$0xff]
  %274 = vrot.lane.b32.xlu0 %v256, 121
  %v275 = vpop.permute.xlu0 %274
  %276 = vrot.lane.b32.xlu0 %v257, 121
  %v277 = vpop.permute.xlu0 %276
  %278 = vrot.lane.b32.xlu0 %v258, 121
  %v279 = vpop.permute.xlu0 %278
  %280 = vrot.lane.b32.xlu0 %v259, 121
  %v281 = vpop.permute.xlu0 %280
  %282 = vrot.lane.b32.xlu0 %v260, 121
  %v283 = vpop.permute.xlu0 %282
  %284 = vrot.lane.b32.xlu0 %v261, 121
  %v285 = vpop.permute.xlu0 %284
  %286 = vrot.lane.b32.xlu0 %v262, 121
  %v287 = vpop.permute.xlu0 %286
  %288 = vrot.lane.b32.xlu0 %v263, 121
  %v289 = vpop.permute.xlu0 %288
  %290 = vrot.lane.b32.xlu0 %v264, 121
  %v291 = vpop.permute.xlu0 %290
  %vm292 = vcmask 990208
  %v293 = vsel %vm292, %v275, %v277
  %v294 = vsel %vm292, %v277, %v279
  %v295 = vsel %vm292, %v281, %v283
  %v296 = vsel %vm292, %v283, %v285
  %v297 = vsel %vm292, %v287, %v289
  %v298 = vsel %vm292, %v289, %v291
  %v305 = vsel %vm68, %v293, 0.0
  %v306 = vsel %vm69, %v294, 0.0
  %v307 = vsel %vm68, %v295, 0.0
  %v308 = vsel %vm69, %v296, 0.0
  %v309 = vsel %vm68, %v297, 0.0
  %v310 = vsel %vm69, %v298, 0.0
  %v312 = vsel %vm29, %v72, 0
  %v315 = vsel %vm29, %v73, 0
  %317 = vmatprep.subr.mxu0 %v306
  %318 = vmatpush1.msra.mxu0 %v305
  %319 = vmatprep.subr.mxu0 %v308
  %320 = vmatpush1.msra.mxu0 %v307
  %321 = vmatprep.subr.mxu0 %v310
  %322 = vmatpush1.msra.mxu0 %v309
  %323 = vmatprep.subr.mxu0 0.0
  %324 = vmatpush1.msra.mxu0 0.0
  %325 = vmatprep.subr.mxu0 0.0
  %326 = vmatpush1.msra.mxu0 0.0
  %327 = vmatprep.subr.mxu0 0.0
  %328 = vmatpush1.msra.mxu0 0.0
  %329 = vmatprep.subr.mxu0 0.0
  %330 = vmatpush1.msra.mxu0 0.0
  %331 = vmatprep.subr.mxu0 0.0
  %332 = vmatpush1.msra.mxu0 0.0
  %333 = vmatprep.subr.mxu0 0.0
  %334 = vmatpush1.msra.mxu0 0.0
  %335 = vmatprep.subr.mxu0 0.0
  %336 = vmatpush1.msra.mxu0 0.0
  %337 = vmatprep.subr.mxu0 0.0
  %338 = vmatpush1.msra.mxu0 0.0
  %339 = vmatprep.subr.mxu0 0.0
  %340 = vmatpush1.msra.mxu0 0.0
  %341 = vmatprep.subr.mxu0 0.0
  %342 = vmatpush1.msra.mxu0 0.0
  %343 = vmatprep.subr.mxu0 0.0
  %344 = vmatpush1.msra.mxu0 0.0
  %345 = vmatprep.subr.mxu0 0.0
  %346 = vmatpush1.msra.mxu0 0.0
  %347 = vmatprep.subr.mxu0 0.0
  %348 = vmatpush1.msra.mxu0 0.0
  %349 = vmatprep.subr.mxu0 0.0
  %350 = vmatpush1.msra.mxu0 0.0
  %351 = vmatprep.subr.mxu0 0.0
  %352 = vmatpush1.msra.mxu0 0.0
  %353 = vmatprep.subr.mxu0 0.0
  %354 = vmatpush1.msra.mxu0 0.0
  %355 = vmatprep.subr.mxu0 0.0
  %356 = vmatpush1.msra.mxu0 0.0
  %357 = vmatprep.subr.mxu0 0.0
  %358 = vmatpush1.msra.mxu0 0.0
  %359 = vmatprep.subr.mxu0 0.0
  %360 = vmatpush1.msra.mxu0 0.0
  %361 = vmatprep.subr.mxu0 0.0
  %362 = vmatpush1.msra.mxu0 0.0
  %363 = vmatprep.subr.mxu0 0.0
  %364 = vmatpush1.msra.mxu0 0.0
  %365 = vmatprep.subr.mxu0 0.0
  %366 = vmatpush1.msra.mxu0 0.0
  %367 = vmatprep.subr.mxu0 0.0
  %368 = vmatpush1.msra.mxu0 0.0
  %369 = vmatprep.subr.mxu0 0.0
  %370 = vmatpush1.msra.mxu0 0.0
  %371 = vmatprep.subr.mxu0 0.0
  %372 = vmatpush1.msra.mxu0 0.0
  %373 = vmatprep.subr.mxu0 0.0
  %374 = vmatpush1.msra.mxu0 0.0
  %375 = vmatprep.subr.mxu0 0.0
  %376 = vmatpush1.msra.mxu0 0.0
  %377 = vmatprep.subr.mxu0 0.0
  %378 = vmatpush1.msra.mxu0 0.0
  %379 = vmatprep.subr.mxu0 0.0
  %380 = vmatpush1.msra.mxu0 0.0
  %381 = vmatprep.mubr.f32.mxu0 0.0
  %382 = vmatmul.mubr.f32.gmra.mrb[0].mxu0 %v312
  %v383 = vpop.f32.mrb[0].mxu0
  %v384 = vadd.f32 0.0, %v383
  %v385 = vpop.f32.mrb[0].mxu0
  %v386 = vadd.f32 0.0, %v385
  %387 = vmatprep.mubr.f32.mxu0 0.0
  %388 = vmatmul.mubr.f32.gmra.mrb[0].mxu0 %v315
  %v389 = vpop.f32.mrb[0].mxu0
  %v390 = vadd.f32 0.0, %v389
  %v391 = vpop.f32.mrb[0].mxu0
  %v392 = vadd.f32 0.0, %v391
  %393 = vdwg.mxu0
  %v394 = vadd.f32 %v249, %v384
  %v395 = vadd.f32 %v249, %v386
  %v396 = vadd.f32 %v254, %v390
  %v397 = vadd.f32 %v254, %v392
  %398 = vrot.lane.b32.xlu0 %v256, 120
  %v399 = vpop.permute.xlu0 %398
  %400 = vrot.lane.b32.xlu0 %v257, 120
  %v401 = vpop.permute.xlu0 %400
  %402 = vrot.lane.b32.xlu0 %v258, 120
  %v403 = vpop.permute.xlu0 %402
  %404 = vrot.lane.b32.xlu0 %v259, 120
  %v405 = vpop.permute.xlu0 %404
  %406 = vrot.lane.b32.xlu0 %v260, 120
  %v407 = vpop.permute.xlu0 %406
  %408 = vrot.lane.b32.xlu0 %v261, 120
  %v409 = vpop.permute.xlu0 %408
  %410 = vrot.lane.b32.xlu0 %v262, 120
  %v411 = vpop.permute.xlu0 %410
  %412 = vrot.lane.b32.xlu0 %v263, 120
  %v413 = vpop.permute.xlu0 %412
  %414 = vrot.lane.b32.xlu0 %v264, 120
  %v415 = vpop.permute.xlu0 %414
  %vm416 = vcmask 982016
  %v417 = vsel %vm416, %v399, %v401
  %v418 = vsel %vm416, %v401, %v403
  %v419 = vsel %vm416, %v405, %v407
  %v420 = vsel %vm416, %v407, %v409
  %v421 = vsel %vm416, %v411, %v413
  %v422 = vsel %vm416, %v413, %v415
  %v430 = vsel %vm29, %v75, 0
  %v433 = vsel %vm29, %v76, 0
  %435 = vmatprep.subr.mxu0 %v418
  %436 = vmatpush1.msra.mxu0 %v417
  %437 = vmatprep.subr.mxu0 %v420
  %438 = vmatpush1.msra.mxu0 %v419
  %439 = vmatprep.subr.mxu0 %v422
  %440 = vmatpush1.msra.mxu0 %v421
  %441 = vmatprep.subr.mxu0 0.0
  %442 = vmatpush1.msra.mxu0 0.0
  %443 = vmatprep.subr.mxu0 0.0
  %444 = vmatpush1.msra.mxu0 0.0
  %445 = vmatprep.subr.mxu0 0.0
  %446 = vmatpush1.msra.mxu0 0.0
  %447 = vmatprep.subr.mxu0 0.0
  %448 = vmatpush1.msra.mxu0 0.0
  %449 = vmatprep.subr.mxu0 0.0
  %450 = vmatpush1.msra.mxu0 0.0
  %451 = vmatprep.subr.mxu0 0.0
  %452 = vmatpush1.msra.mxu0 0.0
  %453 = vmatprep.subr.mxu0 0.0
  %454 = vmatpush1.msra.mxu0 0.0
  %455 = vmatprep.subr.mxu0 0.0
  %456 = vmatpush1.msra.mxu0 0.0
  %457 = vmatprep.subr.mxu0 0.0
  %458 = vmatpush1.msra.mxu0 0.0
  %459 = vmatprep.subr.mxu0 0.0
  %460 = vmatpush1.msra.mxu0 0.0
  %461 = vmatprep.subr.mxu0 0.0
  %462 = vmatpush1.msra.mxu0 0.0
  %463 = vmatprep.subr.mxu0 0.0
  %464 = vmatpush1.msra.mxu0 0.0
  %465 = vmatprep.subr.mxu0 0.0
  %466 = vmatpush1.msra.mxu0 0.0
  %467 = vmatprep.subr.mxu0 0.0
  %468 = vmatpush1.msra.mxu0 0.0
  %469 = vmatprep.subr.mxu0 0.0
  %470 = vmatpush1.msra.mxu0 0.0
  %471 = vmatprep.subr.mxu0 0.0
  %472 = vmatpush1.msra.mxu0 0.0
  %473 = vmatprep.subr.mxu0 0.0
  %474 = vmatpush1.msra.mxu0 0.0
  %475 = vmatprep.subr.mxu0 0.0
  %476 = vmatpush1.msra.mxu0 0.0
  %477 = vmatprep.subr.mxu0 0.0
  %478 = vmatpush1.msra.mxu0 0.0
  %479 = vmatprep.subr.mxu0 0.0
  %480 = vmatpush1.msra.mxu0 0.0
  %481 = vmatprep.subr.mxu0 0.0
  %482 = vmatpush1.msra.mxu0 0.0
  %483 = vmatprep.subr.mxu0 0.0
  %484 = vmatpush1.msra.mxu0 0.0
  %485 = vmatprep.subr.mxu0 0.0
  %486 = vmatpush1.msra.mxu0 0.0
  %487 = vmatprep.subr.mxu0 0.0
  %488 = vmatpush1.msra.mxu0 0.0
  %489 = vmatprep.subr.mxu0 0.0
  %490 = vmatpush1.msra.mxu0 0.0
  %491 = vmatprep.subr.mxu0 0.0
  %492 = vmatpush1.msra.mxu0 0.0
  %493 = vmatprep.subr.mxu0 0.0
  %494 = vmatpush1.msra.mxu0 0.0
  %495 = vmatprep.subr.mxu0 0.0
  %496 = vmatpush1.msra.mxu0 0.0
  %497 = vmatprep.subr.mxu0 0.0
  %498 = vmatpush1.msra.mxu0 0.0
  %499 = vmatprep.mubr.f32.mxu0 0.0
  %500 = vmatmul.mubr.f32.gmra.mrb[0].mxu0 %v430
  %v501 = vpop.f32.mrb[0].mxu0
  %v502 = vadd.f32 0.0, %v501
  %v503 = vpop.f32.mrb[0].mxu0
  %v504 = vadd.f32 0.0, %v503
  %505 = vmatprep.mubr.f32.mxu0 0.0
  %506 = vmatmul.mubr.f32.gmra.mrb[0].mxu0 %v433
  %v507 = vpop.f32.mrb[0].mxu0
  %v508 = vadd.f32 0.0, %v507
  %v509 = vpop.f32.mrb[0].mxu0
  %v510 = vadd.f32 0.0, %v509
  %511 = vdwg.mxu0
  %v512 = vadd.f32 %v394, %v502
  %v513 = vadd.f32 %v395, %v504
  %v514 = vadd.f32 %v396, %v508
  %v515 = vadd.f32 %v397, %v510
  %516 = vrot.lane.b32.xlu0 %v256, 119
  %v517 = vpop.permute.xlu0 %516
  %518 = vrot.lane.b32.xlu0 %v257, 119
  %v519 = vpop.permute.xlu0 %518
  %520 = vrot.lane.b32.xlu0 %v258, 119
  %v521 = vpop.permute.xlu0 %520
  %522 = vrot.lane.b32.xlu0 %v259, 119
  %v523 = vpop.permute.xlu0 %522
  %524 = vrot.lane.b32.xlu0 %v260, 119
  %v525 = vpop.permute.xlu0 %524
  %526 = vrot.lane.b32.xlu0 %v261, 119
  %v527 = vpop.permute.xlu0 %526
  %528 = vrot.lane.b32.xlu0 %v262, 119
  %v529 = vpop.permute.xlu0 %528
  %530 = vrot.lane.b32.xlu0 %v263, 119
  %v531 = vpop.permute.xlu0 %530
  %532 = vrot.lane.b32.xlu0 %v264, 119
  %v533 = vpop.permute.xlu0 %532
  %vm534 = vcmask 973824
  %v535 = vsel %vm534, %v517, %v519
  %v536 = vsel %vm534, %v519, %v521
  %v537 = vsel %vm534, %v523, %v525
  %v538 = vsel %vm534, %v525, %v527
  %v539 = vsel %vm534, %v529, %v531
  %v540 = vsel %vm534, %v531, %v533
  %v547 = vsel %vm70, %v535, 0.0
  %v548 = vsel %vm71, %v536, 0.0
  %v549 = vsel %vm70, %v537, 0.0
  %v550 = vsel %vm71, %v538, 0.0
  %v551 = vsel %vm70, %v539, 0.0
  %v552 = vsel %vm71, %v540, 0.0
  %v554 = vsel %vm29, %v78, 0
  %v557 = vsel %vm29, %v79, 0
  %559 = vmatprep.subr.mxu0 %v548
  %560 = vmatpush1.msra.mxu0 %v547
  %561 = vmatprep.subr.mxu0 %v550
  %562 = vmatpush1.msra.mxu0 %v549
  %563 = vmatprep.subr.mxu0 %v552
  %564 = vmatpush1.msra.mxu0 %v551
  %565 = vmatprep.subr.mxu0 0.0
  %566 = vmatpush1.msra.mxu0 0.0
  %567 = vmatprep.subr.mxu0 0.0
  %568 = vmatpush1.msra.mxu0 0.0
  %569 = vmatprep.subr.mxu0 0.0
  %570 = vmatpush1.msra.mxu0 0.0
  %571 = vmatprep.subr.mxu0 0.0
  %572 = vmatpush1.msra.mxu0 0.0
  %573 = vmatprep.subr.mxu0 0.0
  %574 = vmatpush1.msra.mxu0 0.0
  %575 = vmatprep.subr.mxu0 0.0
  %576 = vmatpush1.msra.mxu0 0.0
  %577 = vmatprep.subr.mxu0 0.0
  %578 = vmatpush1.msra.mxu0 0.0
  %579 = vmatprep.subr.mxu0 0.0
  %580 = vmatpush1.msra.mxu0 0.0
  %581 = vmatprep.subr.mxu0 0.0
  %582 = vmatpush1.msra.mxu0 0.0
  %583 = vmatprep.subr.mxu0 0.0
  %584 = vmatpush1.msra.mxu0 0.0
  %585 = vmatprep.subr.mxu0 0.0
  %586 = vmatpush1.msra.mxu0 0.0
  %587 = vmatprep.subr.mxu0 0.0
  %588 = vmatpush1.msra.mxu0 0.0
  %589 = vmatprep.subr.mxu0 0.0
  %590 = vmatpush1.msra.mxu0 0.0
  %591 = vmatprep.subr.mxu0 0.0
  %592 = vmatpush1.msra.mxu0 0.0
  %593 = vmatprep.subr.mxu0 0.0
  %594 = vmatpush1.msra.mxu0 0.0
  %595 = vmatprep.subr.mxu0 0.0
  %596 = vmatpush1.msra.mxu0 0.0
  %597 = vmatprep.subr.mxu0 0.0
  %598 = vmatpush1.msra.mxu0 0.0
  %599 = vmatprep.subr.mxu0 0.0
  %600 = vmatpush1.msra.mxu0 0.0
  %601 = vmatprep.subr.mxu0 0.0
  %602 = vmatpush1.msra.mxu0 0.0
  %603 = vmatprep.subr.mxu0 0.0
  %604 = vmatpush1.msra.mxu0 0.0
  %605 = vmatprep.subr.mxu0 0.0
  %606 = vmatpush1.msra.mxu0 0.0
  %607 = vmatprep.subr.mxu0 0.0
  %608 = vmatpush1.msra.mxu0 0.0
  %609 = vmatprep.subr.mxu0 0.0
  %610 = vmatpush1.msra.mxu0 0.0
  %611 = vmatprep.subr.mxu0 0.0
  %612 = vmatpush1.msra.mxu0 0.0
  %613 = vmatprep.subr.mxu0 0.0
  %614 = vmatpush1.msra.mxu0 0.0
  %615 = vmatprep.subr.mxu0 0.0
  %616 = vmatpush1.msra.mxu0 0.0
  %617 = vmatprep.subr.mxu0 0.0
  %618 = vmatpush1.msra.mxu0 0.0
  %619 = vmatprep.subr.mxu0 0.0
  %620 = vmatpush1.msra.mxu0 0.0
  %621 = vmatprep.subr.mxu0 0.0
  %622 = vmatpush1.msra.mxu0 0.0
  %623 = vmatprep.mubr.f32.mxu0 0.0
  %624 = vmatmul.mubr.f32.gmra.mrb[0].mxu0 %v554
  %v625 = vpop.f32.mrb[0].mxu0
  %v626 = vadd.f32 0.0, %v625
  %v627 = vpop.f32.mrb[0].mxu0
  %v628 = vadd.f32 0.0, %v627
  %629 = vmatprep.mubr.f32.mxu0 0.0
  %630 = vmatmul.mubr.f32.gmra.mrb[0].mxu0 %v557
  %v631 = vpop.f32.mrb[0].mxu0
  %v632 = vadd.f32 0.0, %v631
  %v633 = vpop.f32.mrb[0].mxu0
  %v634 = vadd.f32 0.0, %v633
  %635 = vdwg.mxu0
  %v636 = vadd.f32 %v512, %v626
  %v637 = vadd.f32 %v513, %v628
  %v638 = vadd.f32 %v514, %v632
  %v639 = vadd.f32 %v515, %v634
  %640 = vrot.lane.b32.xlu0 %v256, 105
  %v641 = vpop.permute.xlu0 %640
  %642 = vrot.lane.b32.xlu0 %v257, 105
  %v643 = vpop.permute.xlu0 %642
  %644 = vrot.lane.b32.xlu0 %v258, 105
  %v645 = vpop.permute.xlu0 %644
  %646 = vrot.lane.b32.xlu0 %v259, 105
  %v647 = vpop.permute.xlu0 %646
  %648 = vrot.lane.b32.xlu0 %v260, 105
  %v649 = vpop.permute.xlu0 %648
  %650 = vrot.lane.b32.xlu0 %v261, 105
  %v651 = vpop.permute.xlu0 %650
  %652 = vrot.lane.b32.xlu0 %v262, 105
  %v653 = vpop.permute.xlu0 %652
  %654 = vrot.lane.b32.xlu0 %v263, 105
  %v655 = vpop.permute.xlu0 %654
  %656 = vrot.lane.b32.xlu0 %v264, 105
  %v657 = vpop.permute.xlu0 %656
  %vm658 = vcmask 859136
  %v659 = vsel %vm658, %v641, %v643
  %v660 = vsel %vm658, %v643, %v645
  %v661 = vsel %vm658, %v647, %v649
  %v662 = vsel %vm658, %v649, %v651
  %v663 = vsel %vm658, %v653, %v655
  %v664 = vsel %vm658, %v655, %v657
  %v671 = vsel %vm68, %v659, 0.0
  %v672 = vsel %vm69, %v660, 0.0
  %v673 = vsel %vm68, %v661, 0.0
  %v674 = vsel %vm69, %v662, 0.0
  %v675 = vsel %vm68, %v663, 0.0
  %v676 = vsel %vm69, %v664, 0.0
  %v678 = vsel %vm29, %v81, 0
  %v681 = vsel %vm29, %v82, 0
  %683 = vmatprep.subr.mxu0 %v672
  %684 = vmatpush1.msra.mxu0 %v671
  %685 = vmatprep.subr.mxu0 %v674
  %686 = vmatpush1.msra.mxu0 %v673
  %687 = vmatprep.subr.mxu0 %v676
  %688 = vmatpush1.msra.mxu0 %v675
  %689 = vmatprep.subr.mxu0 0.0
  %690 = vmatpush1.msra.mxu0 0.0
  %691 = vmatprep.subr.mxu0 0.0
  %692 = vmatpush1.msra.mxu0 0.0
  %693 = vmatprep.subr.mxu0 0.0
  %694 = vmatpush1.msra.mxu0 0.0
  %695 = vmatprep.subr.mxu0 0.0
  %696 = vmatpush1.msra.mxu0 0.0
  %697 = vmatprep.subr.mxu0 0.0
  %698 = vmatpush1.msra.mxu0 0.0
  %699 = vmatprep.subr.mxu0 0.0
  %700 = vmatpush1.msra.mxu0 0.0
  %701 = vmatprep.subr.mxu0 0.0
  %702 = vmatpush1.msra.mxu0 0.0
  %703 = vmatprep.subr.mxu0 0.0
  %704 = vmatpush1.msra.mxu0 0.0
  %705 = vmatprep.subr.mxu0 0.0
  %706 = vmatpush1.msra.mxu0 0.0
  %707 = vmatprep.subr.mxu0 0.0
  %708 = vmatpush1.msra.mxu0 0.0
  %709 = vmatprep.subr.mxu0 0.0
  %710 = vmatpush1.msra.mxu0 0.0
  %711 = vmatprep.subr.mxu0 0.0
  %712 = vmatpush1.msra.mxu0 0.0
  %713 = vmatprep.subr.mxu0 0.0
  %714 = vmatpush1.msra.mxu0 0.0
  %715 = vmatprep.subr.mxu0 0.0
  %716 = vmatpush1.msra.mxu0 0.0
  %717 = vmatprep.subr.mxu0 0.0
  %718 = vmatpush1.msra.mxu0 0.0
  %719 = vmatprep.subr.mxu0 0.0
  %720 = vmatpush1.msra.mxu0 0.0
  %721 = vmatprep.subr.mxu0 0.0
  %722 = vmatpush1.msra.mxu0 0.0
  %723 = vmatprep.subr.mxu0 0.0
  %724 = vmatpush1.msra.mxu0 0.0
  %725 = vmatprep.subr.mxu0 0.0
  %726 = vmatpush1.msra.mxu0 0.0
  %727 = vmatprep.subr.mxu0 0.0
  %728 = vmatpush1.msra.mxu0 0.0
  %729 = vmatprep.subr.mxu0 0.0
  %730 = vmatpush1.msra.mxu0 0.0
  %731 = vmatprep.subr.mxu0 0.0
  %732 = vmatpush1.msra.mxu0 0.0
  %733 = vmatprep.subr.mxu0 0.0
  %734 = vmatpush1.msra.mxu0 0.0
  %735 = vmatprep.subr.mxu0 0.0
  %736 = vmatpush1.msra.mxu0 0.0
  %737 = vmatprep.subr.mxu0 0.0
  %738 = vmatpush1.msra.mxu0 0.0
  %739 = vmatprep.subr.mxu0 0.0
  %740 = vmatpush1.msra.mxu0 0.0
  %741 = vmatprep.subr.mxu0 0.0
  %742 = vmatpush1.msra.mxu0 0.0
  %743 = vmatprep.subr.mxu0 0.0
  %744 = vmatpush1.msra.mxu0 0.0
  %745 = vmatprep.subr.mxu0 0.0
  %746 = vmatpush1.msra.mxu0 0.0
  %747 = vmatprep.mubr.f32.mxu0 0.0
  %748 = vmatmul.mubr.f32.gmra.mrb[0].mxu0 %v678
  %v749 = vpop.f32.mrb[0].mxu0
  %v750 = vadd.f32 0.0, %v749
  %v751 = vpop.f32.mrb[0].mxu0
  %v752 = vadd.f32 0.0, %v751
  %753 = vmatprep.mubr.f32.mxu0 0.0
  %754 = vmatmul.mubr.f32.gmra.mrb[0].mxu0 %v681
  %v755 = vpop.f32.mrb[0].mxu0
  %v756 = vadd.f32 0.0, %v755
  %v757 = vpop.f32.mrb[0].mxu0
  %v758 = vadd.f32 0.0, %v757
  %759 = vdwg.mxu0
  %v760 = vadd.f32 %v636, %v750
  %v761 = vadd.f32 %v637, %v752
  %v762 = vadd.f32 %v638, %v756
  %v763 = vadd.f32 %v639, %v758
  %764 = vrot.lane.b32.xlu0 %v256, 104
  %v765 = vpop.permute.xlu0 %764
  %766 = vrot.lane.b32.xlu0 %v257, 104
  %v767 = vpop.permute.xlu0 %766
  %768 = vrot.lane.b32.xlu0 %v258, 104
  %v769 = vpop.permute.xlu0 %768
  %770 = vrot.lane.b32.xlu0 %v259, 104
  %v771 = vpop.permute.xlu0 %770
  %772 = vrot.lane.b32.xlu0 %v260, 104
  %v773 = vpop.permute.xlu0 %772
  %774 = vrot.lane.b32.xlu0 %v261, 104
  %v775 = vpop.permute.xlu0 %774
  %776 = vrot.lane.b32.xlu0 %v262, 104
  %v777 = vpop.permute.xlu0 %776
  %778 = vrot.lane.b32.xlu0 %v263, 104
  %v779 = vpop.permute.xlu0 %778
  %780 = vrot.lane.b32.xlu0 %v264, 104
  %v781 = vpop.permute.xlu0 %780
  %vm782 = vcmask 850944
  %v783 = vsel %vm782, %v765, %v767
  %v784 = vsel %vm782, %v767, %v769
  %v785 = vsel %vm782, %v771, %v773
  %v786 = vsel %vm782, %v773, %v775
  %v787 = vsel %vm782, %v777, %v779
  %v788 = vsel %vm782, %v779, %v781
  %v796 = vsel %vm29, %v84, 0
  %v799 = vsel %vm29, %v85, 0
  %801 = vmatprep.subr.mxu0 %v784
  %802 = vmatpush1.msra.mxu0 %v783
  %803 = vmatprep.subr.mxu0 %v786
  %804 = vmatpush1.msra.mxu0 %v785
  %805 = vmatprep.subr.mxu0 %v788
  %806 = vmatpush1.msra.mxu0 %v787
  %807 = vmatprep.subr.mxu0 0.0
  %808 = vmatpush1.msra.mxu0 0.0
  %809 = vmatprep.subr.mxu0 0.0
  %810 = vmatpush1.msra.mxu0 0.0
  %811 = vmatprep.subr.mxu0 0.0
  %812 = vmatpush1.msra.mxu0 0.0
  %813 = vmatprep.subr.mxu0 0.0
  %814 = vmatpush1.msra.mxu0 0.0
  %815 = vmatprep.subr.mxu0 0.0
  %816 = vmatpush1.msra.mxu0 0.0
  %817 = vmatprep.subr.mxu0 0.0
  %818 = vmatpush1.msra.mxu0 0.0
  %819 = vmatprep.subr.mxu0 0.0
  %820 = vmatpush1.msra.mxu0 0.0
  %821 = vmatprep.subr.mxu0 0.0
  %822 = vmatpush1.msra.mxu0 0.0
  %823 = vmatprep.subr.mxu0 0.0
  %824 = vmatpush1.msra.mxu0 0.0
  %825 = vmatprep.subr.mxu0 0.0
  %826 = vmatpush1.msra.mxu0 0.0
  %827 = vmatprep.subr.mxu0 0.0
  %828 = vmatpush1.msra.mxu0 0.0
  %829 = vmatprep.subr.mxu0 0.0
  %830 = vmatpush1.msra.mxu0 0.0
  %831 = vmatprep.subr.mxu0 0.0
  %832 = vmatpush1.msra.mxu0 0.0
  %833 = vmatprep.subr.mxu0 0.0
  %834 = vmatpush1.msra.mxu0 0.0
  %835 = vmatprep.subr.mxu0 0.0
  %836 = vmatpush1.msra.mxu0 0.0
  %837 = vmatprep.subr.mxu0 0.0
  %838 = vmatpush1.msra.mxu0 0.0
  %839 = vmatprep.subr.mxu0 0.0
  %840 = vmatpush1.msra.mxu0 0.0
  %841 = vmatprep.subr.mxu0 0.0
  %842 = vmatpush1.msra.mxu0 0.0
  %843 = vmatprep.subr.mxu0 0.0
  %844 = vmatpush1.msra.mxu0 0.0
  %845 = vmatprep.subr.mxu0 0.0
  %846 = vmatpush1.msra.mxu0 0.0
  %847 = vmatprep.subr.mxu0 0.0
  %848 = vmatpush1.msra.mxu0 0.0
  %849 = vmatprep.subr.mxu0 0.0
  %850 = vmatpush1.msra.mxu0 0.0
  %851 = vmatprep.subr.mxu0 0.0
  %852 = vmatpush1.msra.mxu0 0.0
  %853 = vmatprep.subr.mxu0 0.0
  %854 = vmatpush1.msra.mxu0 0.0
  %855 = vmatprep.subr.mxu0 0.0
  %856 = vmatpush1.msra.mxu0 0.0
  %857 = vmatprep.subr.mxu0 0.0
  %858 = vmatpush1.msra.mxu0 0.0
  %859 = vmatprep.subr.mxu0 0.0
  %860 = vmatpush1.msra.mxu0 0.0
  %861 = vmatprep.subr.mxu0 0.0
  %862 = vmatpush1.msra.mxu0 0.0
  %863 = vmatprep.subr.mxu0 0.0
  %864 = vmatpush1.msra.mxu0 0.0
  %865 = vmatprep.mubr.f32.mxu0 0.0
  %866 = vmatmul.mubr.f32.gmra.mrb[0].mxu0 %v796
  %v867 = vpop.f32.mrb[0].mxu0
  %v868 = vadd.f32 0.0, %v867
  %v869 = vpop.f32.mrb[0].mxu0
  %v870 = vadd.f32 0.0, %v869
  %871 = vmatprep.mubr.f32.mxu0 0.0
  %872 = vmatmul.mubr.f32.gmra.mrb[0].mxu0 %v799
  %v873 = vpop.f32.mrb[0].mxu0
  %v874 = vadd.f32 0.0, %v873
  %v875 = vpop.f32.mrb[0].mxu0
  %v876 = vadd.f32 0.0, %v875
  %877 = vdwg.mxu0
  %v878 = vadd.f32 %v760, %v868
  %v879 = vadd.f32 %v761, %v870
  %v880 = vadd.f32 %v762, %v874
  %v881 = vadd.f32 %v763, %v876
  %882 = vrot.lane.b32.xlu0 %v256, 103
  %v883 = vpop.permute.xlu0 %882
  %884 = vrot.lane.b32.xlu0 %v257, 103
  %v885 = vpop.permute.xlu0 %884
  %886 = vrot.lane.b32.xlu0 %v258, 103
  %v887 = vpop.permute.xlu0 %886
  %888 = vrot.lane.b32.xlu0 %v259, 103
  %v889 = vpop.permute.xlu0 %888
  %890 = vrot.lane.b32.xlu0 %v260, 103
  %v891 = vpop.permute.xlu0 %890
  %892 = vrot.lane.b32.xlu0 %v261, 103
  %v893 = vpop.permute.xlu0 %892
  %894 = vrot.lane.b32.xlu0 %v262, 103
  %v895 = vpop.permute.xlu0 %894
  %896 = vrot.lane.b32.xlu0 %v263, 103
  %v897 = vpop.permute.xlu0 %896
  %898 = vrot.lane.b32.xlu0 %v264, 103
  %v899 = vpop.permute.xlu0 %898
  %vm900 = vcmask 842752
  %v901 = vsel %vm900, %v883, %v885
  %v902 = vsel %vm900, %v885, %v887
  %v903 = vsel %vm900, %v889, %v891
  %v904 = vsel %vm900, %v891, %v893
  %v905 = vsel %vm900, %v895, %v897
  %v906 = vsel %vm900, %v897, %v899
  %v913 = vsel %vm70, %v901, 0.0
  %v914 = vsel %vm71, %v902, 0.0
  %v915 = vsel %vm70, %v903, 0.0
  %v916 = vsel %vm71, %v904, 0.0
  %v917 = vsel %vm70, %v905, 0.0
  %v918 = vsel %vm71, %v906, 0.0
  %v920 = vsel %vm29, %v87, 0
  %v923 = vsel %vm29, %v88, 0
  %925 = vmatprep.subr.mxu0 %v914
  %926 = vmatpush1.msra.mxu0 %v913
  %927 = vmatprep.subr.mxu0 %v916
  %928 = vmatpush1.msra.mxu0 %v915
  %929 = vmatprep.subr.mxu0 %v918
  %930 = vmatpush1.msra.mxu0 %v917
  %931 = vmatprep.subr.mxu0 0.0
  %932 = vmatpush1.msra.mxu0 0.0
  %933 = vmatprep.subr.mxu0 0.0
  %934 = vmatpush1.msra.mxu0 0.0
  %935 = vmatprep.subr.mxu0 0.0
  %936 = vmatpush1.msra.mxu0 0.0
  %937 = vmatprep.subr.mxu0 0.0
  %938 = vmatpush1.msra.mxu0 0.0
  %939 = vmatprep.subr.mxu0 0.0
  %940 = vmatpush1.msra.mxu0 0.0
  %941 = vmatprep.subr.mxu0 0.0
  %942 = vmatpush1.msra.mxu0 0.0
  %943 = vmatprep.subr.mxu0 0.0
  %944 = vmatpush1.msra.mxu0 0.0
  %945 = vmatprep.subr.mxu0 0.0
  %946 = vmatpush1.msra.mxu0 0.0
  %947 = vmatprep.subr.mxu0 0.0
  %948 = vmatpush1.msra.mxu0 0.0
  %949 = vmatprep.subr.mxu0 0.0
  %950 = vmatpush1.msra.mxu0 0.0
  %951 = vmatprep.subr.mxu0 0.0
  %952 = vmatpush1.msra.mxu0 0.0
  %953 = vmatprep.subr.mxu0 0.0
  %954 = vmatpush1.msra.mxu0 0.0
  %955 = vmatprep.subr.mxu0 0.0
  %956 = vmatpush1.msra.mxu0 0.0
  %957 = vmatprep.subr.mxu0 0.0
  %958 = vmatpush1.msra.mxu0 0.0
  %959 = vmatprep.subr.mxu0 0.0
  %960 = vmatpush1.msra.mxu0 0.0
  %961 = vmatprep.subr.mxu0 0.0
  %962 = vmatpush1.msra.mxu0 0.0
  %963 = vmatprep.subr.mxu0 0.0
  %964 = vmatpush1.msra.mxu0 0.0
  %965 = vmatprep.subr.mxu0 0.0
  %966 = vmatpush1.msra.mxu0 0.0
  %967 = vmatprep.subr.mxu0 0.0
  %968 = vmatpush1.msra.mxu0 0.0
  %969 = vmatprep.subr.mxu0 0.0
  %970 = vmatpush1.msra.mxu0 0.0
  %971 = vmatprep.subr.mxu0 0.0
  %972 = vmatpush1.msra.mxu0 0.0
  %973 = vmatprep.subr.mxu0 0.0
  %974 = vmatpush1.msra.mxu0 0.0
  %975 = vmatprep.subr.mxu0 0.0
  %976 = vmatpush1.msra.mxu0 0.0
  %977 = vmatprep.subr.mxu0 0.0
  %978 = vmatpush1.msra.mxu0 0.0
  %979 = vmatprep.subr.mxu0 0.0
  %980 = vmatpush1.msra.mxu0 0.0
  %981 = vmatprep.subr.mxu0 0.0
  %982 = vmatpush1.msra.mxu0 0.0
  %983 = vmatprep.subr.mxu0 0.0
  %984 = vmatpush1.msra.mxu0 0.0
  %985 = vmatprep.subr.mxu0 0.0
  %986 = vmatpush1.msra.mxu0 0.0
  %987 = vmatprep.subr.mxu0 0.0
  %988 = vmatpush1.msra.mxu0 0.0
  %989 = vmatprep.mubr.f32.mxu0 0.0
  %990 = vmatmul.mubr.f32.gmra.mrb[0].mxu0 %v920
  %v991 = vpop.f32.mrb[0].mxu0
  %v992 = vadd.f32 0.0, %v991
  %v993 = vpop.f32.mrb[0].mxu0
  %v994 = vadd.f32 0.0, %v993
  %995 = vmatprep.mubr.f32.mxu0 0.0
  %996 = vmatmul.mubr.f32.gmra.mrb[0].mxu0 %v923
  %v997 = vpop.f32.mrb[0].mxu0
  %v998 = vadd.f32 0.0, %v997
  %v999 = vpop.f32.mrb[0].mxu0
  %v1000 = vadd.f32 0.0, %v999
  %1001 = vdwg.mxu0
  %v1002 = vadd.f32 %v878, %v992
  %v1003 = vadd.f32 %v879, %v994
  %v1004 = vadd.f32 %v880, %v998
  %v1005 = vadd.f32 %v881, %v1000
  %1006 = vrot.lane.b32.xlu0 %v256, 89
  %v1007 = vpop.permute.xlu0 %1006
  %1008 = vrot.lane.b32.xlu0 %v257, 89
  %v1009 = vpop.permute.xlu0 %1008
  %1010 = vrot.lane.b32.xlu0 %v258, 89
  %v1011 = vpop.permute.xlu0 %1010
  %1012 = vrot.lane.b32.xlu0 %v259, 89
  %v1013 = vpop.permute.xlu0 %1012
  %1014 = vrot.lane.b32.xlu0 %v260, 89
  %v1015 = vpop.permute.xlu0 %1014
  %1016 = vrot.lane.b32.xlu0 %v261, 89
  %v1017 = vpop.permute.xlu0 %1016
  %1018 = vrot.lane.b32.xlu0 %v262, 89
  %v1019 = vpop.permute.xlu0 %1018
  %1020 = vrot.lane.b32.xlu0 %v263, 89
  %v1021 = vpop.permute.xlu0 %1020
  %1022 = vrot.lane.b32.xlu0 %v264, 89
  %v1023 = vpop.permute.xlu0 %1022
  %vm1024 = vcmask 728064
  %v1025 = vsel %vm1024, %v1007, %v1009
  %v1026 = vsel %vm1024, %v1009, %v1011
  %v1027 = vsel %vm1024, %v1013, %v1015
  %v1028 = vsel %vm1024, %v1015, %v1017
  %v1029 = vsel %vm1024, %v1019, %v1021
  %v1030 = vsel %vm1024, %v1021, %v1023
  %v1037 = vsel %vm68, %v1025, 0.0
  %v1038 = vsel %vm69, %v1026, 0.0
  %v1039 = vsel %vm68, %v1027, 0.0
  %v1040 = vsel %vm69, %v1028, 0.0
  %v1041 = vsel %vm68, %v1029, 0.0
  %v1042 = vsel %vm69, %v1030, 0.0
  %v1044 = vsel %vm29, %v90, 0
  %v1047 = vsel %vm29, %v91, 0
  %1049 = vmatprep.subr.mxu0 %v1038
  %1050 = vmatpush1.msra.mxu0 %v1037
  %1051 = vmatprep.subr.mxu0 %v1040
  %1052 = vmatpush1.msra.mxu0 %v1039
  %1053 = vmatprep.subr.mxu0 %v1042
  %1054 = vmatpush1.msra.mxu0 %v1041
  %1055 = vmatprep.subr.mxu0 0.0
  %1056 = vmatpush1.msra.mxu0 0.0
  %1057 = vmatprep.subr.mxu0 0.0
  %1058 = vmatpush1.msra.mxu0 0.0
  %1059 = vmatprep.subr.mxu0 0.0
  %1060 = vmatpush1.msra.mxu0 0.0
  %1061 = vmatprep.subr.mxu0 0.0
  %1062 = vmatpush1.msra.mxu0 0.0
  %1063 = vmatprep.subr.mxu0 0.0
  %1064 = vmatpush1.msra.mxu0 0.0
  %1065 = vmatprep.subr.mxu0 0.0
  %1066 = vmatpush1.msra.mxu0 0.0
  %1067 = vmatprep.subr.mxu0 0.0
  %1068 = vmatpush1.msra.mxu0 0.0
  %1069 = vmatprep.subr.mxu0 0.0
  %1070 = vmatpush1.msra.mxu0 0.0
  %1071 = vmatprep.subr.mxu0 0.0
  %1072 = vmatpush1.msra.mxu0 0.0
  %1073 = vmatprep.subr.mxu0 0.0
  %1074 = vmatpush1.msra.mxu0 0.0
  %1075 = vmatprep.subr.mxu0 0.0
  %1076 = vmatpush1.msra.mxu0 0.0
  %1077 = vmatprep.subr.mxu0 0.0
  %1078 = vmatpush1.msra.mxu0 0.0
  %1079 = vmatprep.subr.mxu0 0.0
  %1080 = vmatpush1.msra.mxu0 0.0
  %1081 = vmatprep.subr.mxu0 0.0
  %1082 = vmatpush1.msra.mxu0 0.0
  %1083 = vmatprep.subr.mxu0 0.0
  %1084 = vmatpush1.msra.mxu0 0.0
  %1085 = vmatprep.subr.mxu0 0.0
  %1086 = vmatpush1.msra.mxu0 0.0
  %1087 = vmatprep.subr.mxu0 0.0
  %1088 = vmatpush1.msra.mxu0 0.0
  %1089 = vmatprep.subr.mxu0 0.0
  %1090 = vmatpush1.msra.mxu0 0.0
  %1091 = vmatprep.subr.mxu0 0.0
  %1092 = vmatpush1.msra.mxu0 0.0
  %1093 = vmatprep.subr.mxu0 0.0
  %1094 = vmatpush1.msra.mxu0 0.0
  %1095 = vmatprep.subr.mxu0 0.0
  %1096 = vmatpush1.msra.mxu0 0.0
  %1097 = vmatprep.subr.mxu0 0.0
  %1098 = vmatpush1.msra.mxu0 0.0
  %1099 = vmatprep.subr.mxu0 0.0
  %1100 = vmatpush1.msra.mxu0 0.0
  %1101 = vmatprep.subr.mxu0 0.0
  %1102 = vmatpush1.msra.mxu0 0.0
  %1103 = vmatprep.subr.mxu0 0.0
  %1104 = vmatpush1.msra.mxu0 0.0
  %1105 = vmatprep.subr.mxu0 0.0
  %1106 = vmatpush1.msra.mxu0 0.0
  %1107 = vmatprep.subr.mxu0 0.0
  %1108 = vmatpush1.msra.mxu0 0.0
  %1109 = vmatprep.subr.mxu0 0.0
  %1110 = vmatpush1.msra.mxu0 0.0
  %1111 = vmatprep.subr.mxu0 0.0
  %1112 = vmatpush1.msra.mxu0 0.0
  %1113 = vmatprep.mubr.f32.mxu0 0.0
  %1114 = vmatmul.mubr.f32.gmra.mrb[0].mxu0 %v1044
  %v1115 = vpop.f32.mrb[0].mxu0
  %v1116 = vadd.f32 0.0, %v1115
  %v1117 = vpop.f32.mrb[0].mxu0
  %v1118 = vadd.f32 0.0, %v1117
  %1119 = vmatprep.mubr.f32.mxu0 0.0
  %1120 = vmatmul.mubr.f32.gmra.mrb[0].mxu0 %v1047
  %v1121 = vpop.f32.mrb[0].mxu0
  %v1122 = vadd.f32 0.0, %v1121
  %v1123 = vpop.f32.mrb[0].mxu0
  %v1124 = vadd.f32 0.0, %v1123
  %1125 = vdwg.mxu0
  %v1126 = vadd.f32 %v1002, %v1116
  %v1127 = vadd.f32 %v1003, %v1118
  %v1128 = vadd.f32 %v1004, %v1122
  %v1129 = vadd.f32 %v1005, %v1124
  %1130 = vrot.lane.b32.xlu0 %v256, 88
  %v1131 = vpop.permute.xlu0 %1130
  %1132 = vrot.lane.b32.xlu0 %v257, 88
  %v1133 = vpop.permute.xlu0 %1132
  %1134 = vrot.lane.b32.xlu0 %v258, 88
  %v1135 = vpop.permute.xlu0 %1134
  %1136 = vrot.lane.b32.xlu0 %v259, 88
  %v1137 = vpop.permute.xlu0 %1136
  %1138 = vrot.lane.b32.xlu0 %v260, 88
  %v1139 = vpop.permute.xlu0 %1138
  %1140 = vrot.lane.b32.xlu0 %v261, 88
  %v1141 = vpop.permute.xlu0 %1140
  %1142 = vrot.lane.b32.xlu0 %v262, 88
  %v1143 = vpop.permute.xlu0 %1142
  %1144 = vrot.lane.b32.xlu0 %v263, 88
  %v1145 = vpop.permute.xlu0 %1144
  %1146 = vrot.lane.b32.xlu0 %v264, 88
  %v1147 = vpop.permute.xlu0 %1146
  %vm1148 = vcmask 719872
  %v1149 = vsel %vm1148, %v1131, %v1133
  %v1150 = vsel %vm1148, %v1133, %v1135
  %v1151 = vsel %vm1148, %v1137, %v1139
  %v1152 = vsel %vm1148, %v1139, %v1141
  %v1153 = vsel %vm1148, %v1143, %v1145
  %v1154 = vsel %vm1148, %v1145, %v1147
  %v1162 = vsel %vm29, %v93, 0
  %v1165 = vsel %vm29, %v94, 0
  %1167 = vmatprep.subr.mxu0 %v1150
  %1168 = vmatpush1.msra.mxu0 %v1149
  %1169 = vmatprep.subr.mxu0 %v1152
  %1170 = vmatpush1.msra.mxu0 %v1151
  %1171 = vmatprep.subr.mxu0 %v1154
  %1172 = vmatpush1.msra.mxu0 %v1153
  %1173 = vmatprep.subr.mxu0 0.0
  %1174 = vmatpush1.msra.mxu0 0.0
  %1175 = vmatprep.subr.mxu0 0.0
  %1176 = vmatpush1.msra.mxu0 0.0
  %1177 = vmatprep.subr.mxu0 0.0
  %1178 = vmatpush1.msra.mxu0 0.0
  %1179 = vmatprep.subr.mxu0 0.0
  %1180 = vmatpush1.msra.mxu0 0.0
  %1181 = vmatprep.subr.mxu0 0.0
  %1182 = vmatpush1.msra.mxu0 0.0
  %1183 = vmatprep.subr.mxu0 0.0
  %1184 = vmatpush1.msra.mxu0 0.0
  %1185 = vmatprep.subr.mxu0 0.0
  %1186 = vmatpush1.msra.mxu0 0.0
  %1187 = vmatprep.subr.mxu0 0.0
  %1188 = vmatpush1.msra.mxu0 0.0
  %1189 = vmatprep.subr.mxu0 0.0
  %1190 = vmatpush1.msra.mxu0 0.0
  %1191 = vmatprep.subr.mxu0 0.0
  %1192 = vmatpush1.msra.mxu0 0.0
  %1193 = vmatprep.subr.mxu0 0.0
  %1194 = vmatpush1.msra.mxu0 0.0
  %1195 = vmatprep.subr.mxu0 0.0
  %1196 = vmatpush1.msra.mxu0 0.0
  %1197 = vmatprep.subr.mxu0 0.0
  %1198 = vmatpush1.msra.mxu0 0.0
  %1199 = vmatprep.subr.mxu0 0.0
  %1200 = vmatpush1.msra.mxu0 0.0
  %1201 = vmatprep.subr.mxu0 0.0
  %1202 = vmatpush1.msra.mxu0 0.0
  %1203 = vmatprep.subr.mxu0 0.0
  %1204 = vmatpush1.msra.mxu0 0.0
  %1205 = vmatprep.subr.mxu0 0.0
  %1206 = vmatpush1.msra.mxu0 0.0
  %1207 = vmatprep.subr.mxu0 0.0
  %1208 = vmatpush1.msra.mxu0 0.0
  %1209 = vmatprep.subr.mxu0 0.0
  %1210 = vmatpush1.msra.mxu0 0.0
  %1211 = vmatprep.subr.mxu0 0.0
  %1212 = vmatpush1.msra.mxu0 0.0
  %1213 = vmatprep.subr.mxu0 0.0
  %1214 = vmatpush1.msra.mxu0 0.0
  %1215 = vmatprep.subr.mxu0 0.0
  %1216 = vmatpush1.msra.mxu0 0.0
  %1217 = vmatprep.subr.mxu0 0.0
  %1218 = vmatpush1.msra.mxu0 0.0
  %1219 = vmatprep.subr.mxu0 0.0
  %1220 = vmatpush1.msra.mxu0 0.0
  %1221 = vmatprep.subr.mxu0 0.0
  %1222 = vmatpush1.msra.mxu0 0.0
  %1223 = vmatprep.subr.mxu0 0.0
  %1224 = vmatpush1.msra.mxu0 0.0
  %1225 = vmatprep.subr.mxu0 0.0
  %1226 = vmatpush1.msra.mxu0 0.0
  %1227 = vmatprep.subr.mxu0 0.0
  %1228 = vmatpush1.msra.mxu0 0.0
  %1229 = vmatprep.subr.mxu0 0.0
  %1230 = vmatpush1.msra.mxu0 0.0
  %1231 = vmatprep.mubr.f32.mxu0 0.0
  %1232 = vmatmul.mubr.f32.gmra.mrb[0].mxu0 %v1162
  %v1233 = vpop.f32.mrb[0].mxu0
  %v1234 = vadd.f32 0.0, %v1233
  %v1235 = vpop.f32.mrb[0].mxu0
  %v1236 = vadd.f32 0.0, %v1235
  %1237 = vmatprep.mubr.f32.mxu0 0.0
  %1238 = vmatmul.mubr.f32.gmra.mrb[0].mxu0 %v1165
  %v1239 = vpop.f32.mrb[0].mxu0
  %v1240 = vadd.f32 0.0, %v1239
  %v1241 = vpop.f32.mrb[0].mxu0
  %v1242 = vadd.f32 0.0, %v1241
  %1243 = vdwg.mxu0
  %v1244 = vadd.f32 %v1126, %v1234
  %v1245 = vadd.f32 %v1127, %v1236
  %v1246 = vadd.f32 %v1128, %v1240
  %v1247 = vadd.f32 %v1129, %v1242
  %1248 = vrot.lane.b32.xlu0 %v256, 87
  %v1249 = vpop.permute.xlu0 %1248
  %1250 = vrot.lane.b32.xlu0 %v257, 87
  %v1251 = vpop.permute.xlu0 %1250
  %1252 = vrot.lane.b32.xlu0 %v258, 87
  %v1253 = vpop.permute.xlu0 %1252
  %1254 = vrot.lane.b32.xlu0 %v259, 87
  %v1255 = vpop.permute.xlu0 %1254
  %1256 = vrot.lane.b32.xlu0 %v260, 87
  %v1257 = vpop.permute.xlu0 %1256
  %1258 = vrot.lane.b32.xlu0 %v261, 87
  %v1259 = vpop.permute.xlu0 %1258
  %1260 = vrot.lane.b32.xlu0 %v262, 87
  %v1261 = vpop.permute.xlu0 %1260
  %1262 = vrot.lane.b32.xlu0 %v263, 87
  %v1263 = vpop.permute.xlu0 %1262
  %1264 = vrot.lane.b32.xlu0 %v264, 87
  %v1265 = vpop.permute.xlu0 %1264
  %vm1266 = vcmask 711680
  %v1267 = vsel %vm1266, %v1249, %v1251
  %v1268 = vsel %vm1266, %v1251, %v1253
  %v1269 = vsel %vm1266, %v1255, %v1257
  %v1270 = vsel %vm1266, %v1257, %v1259
  %v1271 = vsel %vm1266, %v1261, %v1263
  %v1272 = vsel %vm1266, %v1263, %v1265
  %v1279 = vsel %vm70, %v1267, 0.0
  %v1280 = vsel %vm71, %v1268, 0.0
  %v1281 = vsel %vm70, %v1269, 0.0
  %v1282 = vsel %vm71, %v1270, 0.0
  %v1283 = vsel %vm70, %v1271, 0.0
  %v1284 = vsel %vm71, %v1272, 0.0
  %v1286 = vsel %vm29, %v96, 0
  %v1289 = vsel %vm29, %v97, 0
  %1291 = vmatprep.subr.mxu0 %v1280
  %1292 = vmatpush1.msra.mxu0 %v1279
  %1293 = vmatprep.subr.mxu0 %v1282
  %1294 = vmatpush1.msra.mxu0 %v1281
  %1295 = vmatprep.subr.mxu0 %v1284
  %1296 = vmatpush1.msra.mxu0 %v1283
  %1297 = vmatprep.subr.mxu0 0.0
  %1298 = vmatpush1.msra.mxu0 0.0
  %1299 = vmatprep.subr.mxu0 0.0
  %1300 = vmatpush1.msra.mxu0 0.0
  %1301 = vmatprep.subr.mxu0 0.0
  %1302 = vmatpush1.msra.mxu0 0.0
  %1303 = vmatprep.subr.mxu0 0.0
  %1304 = vmatpush1.msra.mxu0 0.0
  %1305 = vmatprep.subr.mxu0 0.0
  %1306 = vmatpush1.msra.mxu0 0.0
  %1307 = vmatprep.subr.mxu0 0.0
  %1308 = vmatpush1.msra.mxu0 0.0
  %1309 = vmatprep.subr.mxu0 0.0
  %1310 = vmatpush1.msra.mxu0 0.0
  %1311 = vmatprep.subr.mxu0 0.0
  %1312 = vmatpush1.msra.mxu0 0.0
  %1313 = vmatprep.subr.mxu0 0.0
  %1314 = vmatpush1.msra.mxu0 0.0
  %1315 = vmatprep.subr.mxu0 0.0
  %1316 = vmatpush1.msra.mxu0 0.0
  %1317 = vmatprep.subr.mxu0 0.0
  %1318 = vmatpush1.msra.mxu0 0.0
  %1319 = vmatprep.subr.mxu0 0.0
  %1320 = vmatpush1.msra.mxu0 0.0
  %1321 = vmatprep.subr.mxu0 0.0
  %1322 = vmatpush1.msra.mxu0 0.0
  %1323 = vmatprep.subr.mxu0 0.0
  %1324 = vmatpush1.msra.mxu0 0.0
  %1325 = vmatprep.subr.mxu0 0.0
  %1326 = vmatpush1.msra.mxu0 0.0
  %1327 = vmatprep.subr.mxu0 0.0
  %1328 = vmatpush1.msra.mxu0 0.0
  %1329 = vmatprep.subr.mxu0 0.0
  %1330 = vmatpush1.msra.mxu0 0.0
  %1331 = vmatprep.subr.mxu0 0.0
  %1332 = vmatpush1.msra.mxu0 0.0
  %1333 = vmatprep.subr.mxu0 0.0
  %1334 = vmatpush1.msra.mxu0 0.0
  %1335 = vmatprep.subr.mxu0 0.0
  %1336 = vmatpush1.msra.mxu0 0.0
  %1337 = vmatprep.subr.mxu0 0.0
  %1338 = vmatpush1.msra.mxu0 0.0
  %1339 = vmatprep.subr.mxu0 0.0
  %1340 = vmatpush1.msra.mxu0 0.0
  %1341 = vmatprep.subr.mxu0 0.0
  %1342 = vmatpush1.msra.mxu0 0.0
  %1343 = vmatprep.subr.mxu0 0.0
  %1344 = vmatpush1.msra.mxu0 0.0
  %1345 = vmatprep.subr.mxu0 0.0
  %1346 = vmatpush1.msra.mxu0 0.0
  %1347 = vmatprep.subr.mxu0 0.0
  %1348 = vmatpush1.msra.mxu0 0.0
  %1349 = vmatprep.subr.mxu0 0.0
  %1350 = vmatpush1.msra.mxu0 0.0
  %1351 = vmatprep.subr.mxu0 0.0
  %1352 = vmatpush1.msra.mxu0 0.0
  %1353 = vmatprep.subr.mxu0 0.0
  %1354 = vmatpush1.msra.mxu0 0.0
  %1355 = vmatprep.mubr.f32.mxu0 0.0
  %1356 = vmatmul.mubr.f32.gmra.mrb[0].mxu0 %v1286
  %v1357 = vpop.f32.mrb[0].mxu0
  %v1358 = vadd.f32 0.0, %v1357
  %v1359 = vpop.f32.mrb[0].mxu0
  %v1360 = vadd.f32 0.0, %v1359
  %1361 = vmatprep.mubr.f32.mxu0 0.0
  %1362 = vmatmul.mubr.f32.gmra.mrb[0].mxu0 %v1289
  %v1363 = vpop.f32.mrb[0].mxu0
  %v1364 = vadd.f32 0.0, %v1363
  %v1365 = vpop.f32.mrb[0].mxu0
  %v1366 = vadd.f32 0.0, %v1365
  %1367 = vdwg.mxu0
  %v1368 = vadd.f32 %v1244, %v1358
  %v1369 = vadd.f32 %v1245, %v1360
  %v1370 = vadd.f32 %v1246, %v1364
  %v1371 = vadd.f32 %v1247, %v1366
  %1372 = vst [vmem:[%s7] sm:$0xff] %v1368
  %1373 = vst [vmem:[%s7 + $0x8] sm:$0xff] %v1369
  %1374 = vst [vmem:[%s7 + $0x10] sm:$0xff] %v1370
  %1375 = vst [vmem:[%s7 + $0x18] sm:$0xff] %v1371
  %s1376 = scalar_lea.vmem %s0, 16
  %v1377 = vld [vmem:[%s1376] sm:$0xff]
  %v1378 = vld [vmem:[%s1376 + $0x8] sm:$0xff]
  %1379 = vmatprep.subr.mxu0 %v1378
  %1380 = vmatpush1.msra.mxu0 %v1377
  %1381 = vmatprep.subr.mxu0 0.0
  %1382 = vmatpush1.msra.mxu0 0.0
  %1383 = vmatprep.subr.mxu0 0.0
  %1384 = vmatpush1.msra.mxu0 0.0
  %1385 = vmatprep.subr.mxu0 0.0
  %1386 = vmatpush1.msra.mxu0 0.0
  %1387 = vmatprep.subr.mxu0 0.0
  %1388 = vmatpush1.msra.mxu0 0.0
  %1389 = vmatprep.subr.mxu0 0.0
  %1390 = vmatpush1.msra.mxu0 0.0
  %1391 = vmatprep.subr.mxu0 0.0
  %1392 = vmatpush1.msra.mxu0 0.0
  %1393 = vmatprep.subr.mxu0 0.0
  %1394 = vmatpush1.msra.mxu0 0.0
  %1395 = vmatprep.subr.mxu0 0.0
  %1396 = vmatpush1.msra.mxu0 0.0
  %1397 = vmatprep.subr.mxu0 0.0
  %1398 = vmatpush1.msra.mxu0 0.0
  %1399 = vmatprep.subr.mxu0 0.0
  %1400 = vmatpush1.msra.mxu0 0.0
  %1401 = vmatprep.subr.mxu0 0.0
  %1402 = vmatpush1.msra.mxu0 0.0
  %1403 = vmatprep.subr.mxu0 0.0
  %1404 = vmatpush1.msra.mxu0 0.0
  %1405 = vmatprep.subr.mxu0 0.0
  %1406 = vmatpush1.msra.mxu0 0.0
  %1407 = vmatprep.subr.mxu0 0.0
  %1408 = vmatpush1.msra.mxu0 0.0
  %1409 = vmatprep.subr.mxu0 0.0
  %1410 = vmatpush1.msra.mxu0 0.0
  %1411 = vmatprep.subr.mxu0 0.0
  %1412 = vmatpush1.msra.mxu0 0.0
  %1413 = vmatprep.subr.mxu0 0.0
  %1414 = vmatpush1.msra.mxu0 0.0
  %1415 = vmatprep.subr.mxu0 0.0
  %1416 = vmatpush1.msra.mxu0 0.0
  %1417 = vmatprep.subr.mxu0 0.0
  %1418 = vmatpush1.msra.mxu0 0.0
  %1419 = vmatprep.subr.mxu0 0.0
  %1420 = vmatpush1.msra.mxu0 0.0
  %1421 = vmatprep.subr.mxu0 0.0
  %1422 = vmatpush1.msra.mxu0 0.0
  %1423 = vmatprep.subr.mxu0 0.0
  %1424 = vmatpush1.msra.mxu0 0.0
  %1425 = vmatprep.subr.mxu0 0.0
  %1426 = vmatpush1.msra.mxu0 0.0
  %1427 = vmatprep.subr.mxu0 0.0
  %1428 = vmatpush1.msra.mxu0 0.0
  %1429 = vmatprep.subr.mxu0 0.0
  %1430 = vmatpush1.msra.mxu0 0.0
  %1431 = vmatprep.subr.mxu0 0.0
  %1432 = vmatpush1.msra.mxu0 0.0
  %1433 = vmatprep.subr.mxu0 0.0
  %1434 = vmatpush1.msra.mxu0 0.0
  %1435 = vmatprep.subr.mxu0 0.0
  %1436 = vmatpush1.msra.mxu0 0.0
  %1437 = vmatprep.subr.mxu0 0.0
  %1438 = vmatpush1.msra.mxu0 0.0
  %1439 = vmatprep.subr.mxu0 0.0
  %1440 = vmatpush1.msra.mxu0 0.0
  %1441 = vmatprep.subr.mxu0 0.0
  %1442 = vmatpush1.msra.mxu0 0.0
  %1443 = vmatprep.mubr.f32.mxu0 0.0
  %1444 = vmatmul.mubr.f32.gmra.mrb[0].mxu0 %v114
  %v1445 = vpop.f32.mrb[0].mxu0
  %v1446 = vadd.f32 %v105, %v1445
  %v1447 = vpop.f32.mrb[0].mxu0
  %v1448 = vadd.f32 %v105, %v1447
  %1449 = vmatprep.mubr.f32.mxu0 0.0
  %1450 = vmatmul.mubr.f32.gmra.mrb[0].mxu0 %v117
  %v1451 = vpop.f32.mrb[0].mxu0
  %v1452 = vadd.f32 %v110, %v1451
  %v1453 = vpop.f32.mrb[0].mxu0
  %v1454 = vadd.f32 %v110, %v1453
  %1455 = vdwg.mxu0
  %s1456 = scalar_lea.vmem %s1, 8
  %v1457 = vld [vmem:[%s1456] sm:$0xff]
  %s1458 = scalar_lea.vmem %s6, 48
  %1459 = vst [vmem:[%s1458] sm:$0xff] %v1446
  %1460 = vst [vmem:[%s1458 + $0x8] sm:$0xff] %v1448
  %1461 = vst [vmem:[%s1458 + $0x10] sm:$0xff] %v1452
  %1462 = vst [vmem:[%s1458 + $0x18] sm:$0xff] %v1454
  %v1464 = vcombine.high %v1457, %v1457
  %1466 = vst [vmem:[%s1458 + $0x20] sm:$0xf] %v1457
  %1467 = vst [vmem:[%s1458 + $0x28] sm:$0xf] %v1464
  %1472 = vrot.lane.b32.xlu0 %v1446, 24
  %v1473 = vpop.permute.xlu0 %1472
  %1474 = vrot.lane.b32.xlu0 %v1448, 24
  %v1475 = vpop.permute.xlu0 %1474
  %1476 = vrot.lane.b32.xlu0 %v1452, 24
  %v1477 = vpop.permute.xlu0 %1476
  %1478 = vrot.lane.b32.xlu0 %v1454, 24
  %v1479 = vpop.permute.xlu0 %1478
  %v1480 = vsel %vm29, %v1473, %v1475
  %v1481 = vsel %vm29, %v1477, %v1479
  %1488 = vst.msk [vmem:[#allocation2] sm:$0xff] %vm226, %v1473
  %1489 = vst [vmem:[#allocation2 + $0x8] sm:$0xff] %v1480
  %1490 = vst.msk [vmem:[#allocation2 + $0x10] sm:$0xff] %vm29, %v1475
  %1491 = vst.msk [vmem:[#allocation2 + $0x18] sm:$0xff] %vm226, %v1477
  %1492 = vst [vmem:[#allocation2 + $0x20] sm:$0xff] %v1481
  %1493 = vst.msk [vmem:[#allocation2 + $0x28] sm:$0xff] %vm29, %v1479
  %1494 = vrot.lane.b32.xlu0 %v1457, 24
  %v1495 = vpop.permute.xlu0 %1494
  %1496 = vrot.lane.b32.xlu0 %v1464, 24
  %v1497 = vpop.permute.xlu0 %1496
  %v1498 = vsel %vm29, %v1495, %v1497
  %1502 = vst.msk [vmem:[#allocation2 + $0x30] sm:$0xf] %vm241, %v1495
  %1503 = vst [vmem:[#allocation2 + $0x38] sm:$0xf] %v1498
  %1504 = vst.msk [vmem:[#allocation2 + $0x40] sm:$0xf] %vm244, %v1497
  %v1505 = vld [vmem:[#allocation2] sm:$0xff]
  %v1506 = vld [vmem:[#allocation2 + $0x8] sm:$0xff]
  %v1507 = vld [vmem:[#allocation2 + $0x10] sm:$0xff]
  %v1508 = vld [vmem:[#allocation2 + $0x18] sm:$0xff]
  %v1509 = vld [vmem:[#allocation2 + $0x20] sm:$0xff]
  %v1510 = vld [vmem:[#allocation2 + $0x28] sm:$0xff]
  %v1511 = vld [vmem:[#allocation2 + $0x30] sm:$0xff]
  %v1512 = vld [vmem:[#allocation2 + $0x38] sm:$0xff]
  %v1513 = vld [vmem:[#allocation2 + $0x40] sm:$0xff]
  %1523 = vrot.lane.b32.xlu0 %v1505, 121
  %v1524 = vpop.permute.xlu0 %1523
  %1525 = vrot.lane.b32.xlu0 %v1506, 121
  %v1526 = vpop.permute.xlu0 %1525
  %1527 = vrot.lane.b32.xlu0 %v1507, 121
  %v1528 = vpop.permute.xlu0 %1527
  %1529 = vrot.lane.b32.xlu0 %v1508, 121
  %v1530 = vpop.permute.xlu0 %1529
  %1531 = vrot.lane.b32.xlu0 %v1509, 121
  %v1532 = vpop.permute.xlu0 %1531
  %1533 = vrot.lane.b32.xlu0 %v1510, 121
  %v1534 = vpop.permute.xlu0 %1533
  %1535 = vrot.lane.b32.xlu0 %v1511, 121
  %v1536 = vpop.permute.xlu0 %1535
  %1537 = vrot.lane.b32.xlu0 %v1512, 121
  %v1538 = vpop.permute.xlu0 %1537
  %1539 = vrot.lane.b32.xlu0 %v1513, 121
  %v1540 = vpop.permute.xlu0 %1539
  %v1541 = vsel %vm292, %v1524, %v1526
  %v1542 = vsel %vm292, %v1526, %v1528
  %v1543 = vsel %vm292, %v1530, %v1532
  %v1544 = vsel %vm292, %v1532, %v1534
  %v1545 = vsel %vm292, %v1536, %v1538
  %v1546 = vsel %vm292, %v1538, %v1540
  %v1553 = vsel %vm68, %v1541, 0.0
  %v1554 = vsel %vm69, %v1542, 0.0
  %v1555 = vsel %vm68, %v1543, 0.0
  %v1556 = vsel %vm69, %v1544, 0.0
  %v1557 = vsel %vm68, %v1545, 0.0
  %v1558 = vsel %vm69, %v1546, 0.0
  %1559 = vmatprep.subr.mxu0 %v1554
  %1560 = vmatpush1.msra.mxu0 %v1553
  %1561 = vmatprep.subr.mxu0 %v1556
  %1562 = vmatpush1.msra.mxu0 %v1555
  %1563 = vmatprep.subr.mxu0 %v1558
  %1564 = vmatpush1.msra.mxu0 %v1557
  %1565 = vmatprep.subr.mxu0 0.0
  %1566 = vmatpush1.msra.mxu0 0.0
  %1567 = vmatprep.subr.mxu0 0.0
  %1568 = vmatpush1.msra.mxu0 0.0
  %1569 = vmatprep.subr.mxu0 0.0
  %1570 = vmatpush1.msra.mxu0 0.0
  %1571 = vmatprep.subr.mxu0 0.0
  %1572 = vmatpush1.msra.mxu0 0.0
  %1573 = vmatprep.subr.mxu0 0.0
  %1574 = vmatpush1.msra.mxu0 0.0
  %1575 = vmatprep.subr.mxu0 0.0
  %1576 = vmatpush1.msra.mxu0 0.0
  %1577 = vmatprep.subr.mxu0 0.0
  %1578 = vmatpush1.msra.mxu0 0.0
  %1579 = vmatprep.subr.mxu0 0.0
  %1580 = vmatpush1.msra.mxu0 0.0
  %1581 = vmatprep.subr.mxu0 0.0
  %1582 = vmatpush1.msra.mxu0 0.0
  %1583 = vmatprep.subr.mxu0 0.0
  %1584 = vmatpush1.msra.mxu0 0.0
  %1585 = vmatprep.subr.mxu0 0.0
  %1586 = vmatpush1.msra.mxu0 0.0
  %1587 = vmatprep.subr.mxu0 0.0
  %1588 = vmatpush1.msra.mxu0 0.0
  %1589 = vmatprep.subr.mxu0 0.0
  %1590 = vmatpush1.msra.mxu0 0.0
  %1591 = vmatprep.subr.mxu0 0.0
  %1592 = vmatpush1.msra.mxu0 0.0
  %1593 = vmatprep.subr.mxu0 0.0
  %1594 = vmatpush1.msra.mxu0 0.0
  %1595 = vmatprep.subr.mxu0 0.0
  %1596 = vmatpush1.msra.mxu0 0.0
  %1597 = vmatprep.subr.mxu0 0.0
  %1598 = vmatpush1.msra.mxu0 0.0
  %1599 = vmatprep.subr.mxu0 0.0
  %1600 = vmatpush1.msra.mxu0 0.0
  %1601 = vmatprep.subr.mxu0 0.0
  %1602 = vmatpush1.msra.mxu0 0.0
  %1603 = vmatprep.subr.mxu0 0.0
  %1604 = vmatpush1.msra.mxu0 0.0
  %1605 = vmatprep.subr.mxu0 0.0
  %1606 = vmatpush1.msra.mxu0 0.0
  %1607 = vmatprep.subr.mxu0 0.0
  %1608 = vmatpush1.msra.mxu0 0.0
  %1609 = vmatprep.subr.mxu0 0.0
  %1610 = vmatpush1.msra.mxu0 0.0
  %1611 = vmatprep.subr.mxu0 0.0
  %1612 = vmatpush1.msra.mxu0 0.0
  %1613 = vmatprep.subr.mxu0 0.0
  %1614 = vmatpush1.msra.mxu0 0.0
  %1615 = vmatprep.subr.mxu0 0.0
  %1616 = vmatpush1.msra.mxu0 0.0
  %1617 = vmatprep.subr.mxu0 0.0
  %1618 = vmatpush1.msra.mxu0 0.0
  %1619 = vmatprep.subr.mxu0 0.0
  %1620 = vmatpush1.msra.mxu0 0.0
  %1621 = vmatprep.subr.mxu0 0.0
  %1622 = vmatpush1.msra.mxu0 0.0
  %1623 = vmatprep.mubr.f32.mxu0 0.0
  %1624 = vmatmul.mubr.f32.gmra.mrb[0].mxu0 %v312
  %v1625 = vpop.f32.mrb[0].mxu0
  %v1626 = vadd.f32 0.0, %v1625
  %v1627 = vpop.f32.mrb[0].mxu0
  %v1628 = vadd.f32 0.0, %v1627
  %1629 = vmatprep.mubr.f32.mxu0 0.0
  %1630 = vmatmul.mubr.f32.gmra.mrb[0].mxu0 %v315
  %v1631 = vpop.f32.mrb[0].mxu0
  %v1632 = vadd.f32 0.0, %v1631
  %v1633 = vpop.f32.mrb[0].mxu0
  %v1634 = vadd.f32 0.0, %v1633
  %1635 = vdwg.mxu0
  %v1636 = vadd.f32 %v249, %v1626
  %v1637 = vadd.f32 %v249, %v1628
  %v1638 = vadd.f32 %v254, %v1632
  %v1639 = vadd.f32 %v254, %v1634
  %1640 = vrot.lane.b32.xlu0 %v1505, 120
  %v1641 = vpop.permute.xlu0 %1640
  %1642 = vrot.lane.b32.xlu0 %v1506, 120
  %v1643 = vpop.permute.xlu0 %1642
  %1644 = vrot.lane.b32.xlu0 %v1507, 120
  %v1645 = vpop.permute.xlu0 %1644
  %1646 = vrot.lane.b32.xlu0 %v1508, 120
  %v1647 = vpop.permute.xlu0 %1646
  %1648 = vrot.lane.b32.xlu0 %v1509, 120
  %v1649 = vpop.permute.xlu0 %1648
  %1650 = vrot.lane.b32.xlu0 %v1510, 120
  %v1651 = vpop.permute.xlu0 %1650
  %1652 = vrot.lane.b32.xlu0 %v1511, 120
  %v1653 = vpop.permute.xlu0 %1652
  %1654 = vrot.lane.b32.xlu0 %v1512, 120
  %v1655 = vpop.permute.xlu0 %1654
  %1656 = vrot.lane.b32.xlu0 %v1513, 120
  %v1657 = vpop.permute.xlu0 %1656
  %v1658 = vsel %vm416, %v1641, %v1643
  %v1659 = vsel %vm416, %v1643, %v1645
  %v1660 = vsel %vm416, %v1647, %v1649
  %v1661 = vsel %vm416, %v1649, %v1651
  %v1662 = vsel %vm416, %v1653, %v1655
  %v1663 = vsel %vm416, %v1655, %v1657
  %1670 = vmatprep.subr.mxu0 %v1659
  %1671 = vmatpush1.msra.mxu0 %v1658
  %1672 = vmatprep.subr.mxu0 %v1661
  %1673 = vmatpush1.msra.mxu0 %v1660
  %1674 = vmatprep.subr.mxu0 %v1663
  %1675 = vmatpush1.msra.mxu0 %v1662
  %1676 = vmatprep.subr.mxu0 0.0
  %1677 = vmatpush1.msra.mxu0 0.0
  %1678 = vmatprep.subr.mxu0 0.0
  %1679 = vmatpush1.msra.mxu0 0.0
  %1680 = vmatprep.subr.mxu0 0.0
  %1681 = vmatpush1.msra.mxu0 0.0
  %1682 = vmatprep.subr.mxu0 0.0
  %1683 = vmatpush1.msra.mxu0 0.0
  %1684 = vmatprep.subr.mxu0 0.0
  %1685 = vmatpush1.msra.mxu0 0.0
  %1686 = vmatprep.subr.mxu0 0.0
  %1687 = vmatpush1.msra.mxu0 0.0
  %1688 = vmatprep.subr.mxu0 0.0
  %1689 = vmatpush1.msra.mxu0 0.0
  %1690 = vmatprep.subr.mxu0 0.0
  %1691 = vmatpush1.msra.mxu0 0.0
  %1692 = vmatprep.subr.mxu0 0.0
  %1693 = vmatpush1.msra.mxu0 0.0
  %1694 = vmatprep.subr.mxu0 0.0
  %1695 = vmatpush1.msra.mxu0 0.0
  %1696 = vmatprep.subr.mxu0 0.0
  %1697 = vmatpush1.msra.mxu0 0.0
  %1698 = vmatprep.subr.mxu0 0.0
  %1699 = vmatpush1.msra.mxu0 0.0
  %1700 = vmatprep.subr.mxu0 0.0
  %1701 = vmatpush1.msra.mxu0 0.0
  %1702 = vmatprep.subr.mxu0 0.0
  %1703 = vmatpush1.msra.mxu0 0.0
  %1704 = vmatprep.subr.mxu0 0.0
  %1705 = vmatpush1.msra.mxu0 0.0
  %1706 = vmatprep.subr.mxu0 0.0
  %1707 = vmatpush1.msra.mxu0 0.0
  %1708 = vmatprep.subr.mxu0 0.0
  %1709 = vmatpush1.msra.mxu0 0.0
  %1710 = vmatprep.subr.mxu0 0.0
  %1711 = vmatpush1.msra.mxu0 0.0
  %1712 = vmatprep.subr.mxu0 0.0
  %1713 = vmatpush1.msra.mxu0 0.0
  %1714 = vmatprep.subr.mxu0 0.0
  %1715 = vmatpush1.msra.mxu0 0.0
  %1716 = vmatprep.subr.mxu0 0.0
  %1717 = vmatpush1.msra.mxu0 0.0
  %1718 = vmatprep.subr.mxu0 0.0
  %1719 = vmatpush1.msra.mxu0 0.0
  %1720 = vmatprep.subr.mxu0 0.0
  %1721 = vmatpush1.msra.mxu0 0.0
  %1722 = vmatprep.subr.mxu0 0.0
  %1723 = vmatpush1.msra.mxu0 0.0
  %1724 = vmatprep.subr.mxu0 0.0
  %1725 = vmatpush1.msra.mxu0 0.0
  %1726 = vmatprep.subr.mxu0 0.0
  %1727 = vmatpush1.msra.mxu0 0.0
  %1728 = vmatprep.subr.mxu0 0.0
  %1729 = vmatpush1.msra.mxu0 0.0
  %1730 = vmatprep.subr.mxu0 0.0
  %1731 = vmatpush1.msra.mxu0 0.0
  %1732 = vmatprep.subr.mxu0 0.0
  %1733 = vmatpush1.msra.mxu0 0.0
  %1734 = vmatprep.mubr.f32.mxu0 0.0
  %1735 = vmatmul.mubr.f32.gmra.mrb[0].mxu0 %v430
  %v1736 = vpop.f32.mrb[0].mxu0
  %v1737 = vadd.f32 0.0, %v1736
  %v1738 = vpop.f32.mrb[0].mxu0
  %v1739 = vadd.f32 0.0, %v1738
  %1740 = vmatprep.mubr.f32.mxu0 0.0
  %1741 = vmatmul.mubr.f32.gmra.mrb[0].mxu0 %v433
  %v1742 = vpop.f32.mrb[0].mxu0
  %v1743 = vadd.f32 0.0, %v1742
  %v1744 = vpop.f32.mrb[0].mxu0
  %v1745 = vadd.f32 0.0, %v1744
  %1746 = vdwg.mxu0
  %v1747 = vadd.f32 %v1636, %v1737
  %v1748 = vadd.f32 %v1637, %v1739
  %v1749 = vadd.f32 %v1638, %v1743
  %v1750 = vadd.f32 %v1639, %v1745
  %1751 = vrot.lane.b32.xlu0 %v1505, 119
  %v1752 = vpop.permute.xlu0 %1751
  %1753 = vrot.lane.b32.xlu0 %v1506, 119
  %v1754 = vpop.permute.xlu0 %1753
  %1755 = vrot.lane.b32.xlu0 %v1507, 119
  %v1756 = vpop.permute.xlu0 %1755
  %1757 = vrot.lane.b32.xlu0 %v1508, 119
  %v1758 = vpop.permute.xlu0 %1757
  %1759 = vrot.lane.b32.xlu0 %v1509, 119
  %v1760 = vpop.permute.xlu0 %1759
  %1761 = vrot.lane.b32.xlu0 %v1510, 119
  %v1762 = vpop.permute.xlu0 %1761
  %1763 = vrot.lane.b32.xlu0 %v1511, 119
  %v1764 = vpop.permute.xlu0 %1763
  %1765 = vrot.lane.b32.xlu0 %v1512, 119
  %v1766 = vpop.permute.xlu0 %1765
  %1767 = vrot.lane.b32.xlu0 %v1513, 119
  %v1768 = vpop.permute.xlu0 %1767
  %v1769 = vsel %vm534, %v1752, %v1754
  %v1770 = vsel %vm534, %v1754, %v1756
  %v1771 = vsel %vm534, %v1758, %v1760
  %v1772 = vsel %vm534, %v1760, %v1762
  %v1773 = vsel %vm534, %v1764, %v1766
  %v1774 = vsel %vm534, %v1766, %v1768
  %v1781 = vsel %vm70, %v1769, 0.0
  %v1782 = vsel %vm71, %v1770, 0.0
  %v1783 = vsel %vm70, %v1771, 0.0
  %v1784 = vsel %vm71, %v1772, 0.0
  %v1785 = vsel %vm70, %v1773, 0.0
  %v1786 = vsel %vm71, %v1774, 0.0
  %1787 = vmatprep.subr.mxu0 %v1782
  %1788 = vmatpush1.msra.mxu0 %v1781
  %1789 = vmatprep.subr.mxu0 %v1784
  %1790 = vmatpush1.msra.mxu0 %v1783
  %1791 = vmatprep.subr.mxu0 %v1786
  %1792 = vmatpush1.msra.mxu0 %v1785
  %1793 = vmatprep.subr.mxu0 0.0
  %1794 = vmatpush1.msra.mxu0 0.0
  %1795 = vmatprep.subr.mxu0 0.0
  %1796 = vmatpush1.msra.mxu0 0.0
  %1797 = vmatprep.subr.mxu0 0.0
  %1798 = vmatpush1.msra.mxu0 0.0
  %1799 = vmatprep.subr.mxu0 0.0
  %1800 = vmatpush1.msra.mxu0 0.0
  %1801 = vmatprep.subr.mxu0 0.0
  %1802 = vmatpush1.msra.mxu0 0.0
  %1803 = vmatprep.subr.mxu0 0.0
  %1804 = vmatpush1.msra.mxu0 0.0
  %1805 = vmatprep.subr.mxu0 0.0
  %1806 = vmatpush1.msra.mxu0 0.0
  %1807 = vmatprep.subr.mxu0 0.0
  %1808 = vmatpush1.msra.mxu0 0.0
  %1809 = vmatprep.subr.mxu0 0.0
  %1810 = vmatpush1.msra.mxu0 0.0
  %1811 = vmatprep.subr.mxu0 0.0
  %1812 = vmatpush1.msra.mxu0 0.0
  %1813 = vmatprep.subr.mxu0 0.0
  %1814 = vmatpush1.msra.mxu0 0.0
  %1815 = vmatprep.subr.mxu0 0.0
  %1816 = vmatpush1.msra.mxu0 0.0
  %1817 = vmatprep.subr.mxu0 0.0
  %1818 = vmatpush1.msra.mxu0 0.0
  %1819 = vmatprep.subr.mxu0 0.0
  %1820 = vmatpush1.msra.mxu0 0.0
  %1821 = vmatprep.subr.mxu0 0.0
  %1822 = vmatpush1.msra.mxu0 0.0
  %1823 = vmatprep.subr.mxu0 0.0
  %1824 = vmatpush1.msra.mxu0 0.0
  %1825 = vmatprep.subr.mxu0 0.0
  %1826 = vmatpush1.msra.mxu0 0.0
  %1827 = vmatprep.subr.mxu0 0.0
  %1828 = vmatpush1.msra.mxu0 0.0
  %1829 = vmatprep.subr.mxu0 0.0
  %1830 = vmatpush1.msra.mxu0 0.0
  %1831 = vmatprep.subr.mxu0 0.0
  %1832 = vmatpush1.msra.mxu0 0.0
  %1833 = vmatprep.subr.mxu0 0.0
  %1834 = vmatpush1.msra.mxu0 0.0
  %1835 = vmatprep.subr.mxu0 0.0
  %1836 = vmatpush1.msra.mxu0 0.0
  %1837 = vmatprep.subr.mxu0 0.0
  %1838 = vmatpush1.msra.mxu0 0.0
  %1839 = vmatprep.subr.mxu0 0.0
  %1840 = vmatpush1.msra.mxu0 0.0
  %1841 = vmatprep.subr.mxu0 0.0
  %1842 = vmatpush1.msra.mxu0 0.0
  %1843 = vmatprep.subr.mxu0 0.0
  %1844 = vmatpush1.msra.mxu0 0.0
  %1845 = vmatprep.subr.mxu0 0.0
  %1846 = vmatpush1.msra.mxu0 0.0
  %1847 = vmatprep.subr.mxu0 0.0
  %1848 = vmatpush1.msra.mxu0 0.0
  %1849 = vmatprep.subr.mxu0 0.0
  %1850 = vmatpush1.msra.mxu0 0.0
  %1851 = vmatprep.mubr.f32.mxu0 0.0
  %1852 = vmatmul.mubr.f32.gmra.mrb[0].mxu0 %v554
  %v1853 = vpop.f32.mrb[0].mxu0
  %v1854 = vadd.f32 0.0, %v1853
  %v1855 = vpop.f32.mrb[0].mxu0
  %v1856 = vadd.f32 0.0, %v1855
  %1857 = vmatprep.mubr.f32.mxu0 0.0
  %1858 = vmatmul.mubr.f32.gmra.mrb[0].mxu0 %v557
  %v1859 = vpop.f32.mrb[0].mxu0
  %v1860 = vadd.f32 0.0, %v1859
  %v1861 = vpop.f32.mrb[0].mxu0
  %v1862 = vadd.f32 0.0, %v1861
  %1863 = vdwg.mxu0
  %v1864 = vadd.f32 %v1747, %v1854
  %v1865 = vadd.f32 %v1748, %v1856
  %v1866 = vadd.f32 %v1749, %v1860
  %v1867 = vadd.f32 %v1750, %v1862
  %1868 = vrot.lane.b32.xlu0 %v1505, 105
  %v1869 = vpop.permute.xlu0 %1868
  %1870 = vrot.lane.b32.xlu0 %v1506, 105
  %v1871 = vpop.permute.xlu0 %1870
  %1872 = vrot.lane.b32.xlu0 %v1507, 105
  %v1873 = vpop.permute.xlu0 %1872
  %1874 = vrot.lane.b32.xlu0 %v1508, 105
  %v1875 = vpop.permute.xlu0 %1874
  %1876 = vrot.lane.b32.xlu0 %v1509, 105
  %v1877 = vpop.permute.xlu0 %1876
  %1878 = vrot.lane.b32.xlu0 %v1510, 105
  %v1879 = vpop.permute.xlu0 %1878
  %1880 = vrot.lane.b32.xlu0 %v1511, 105
  %v1881 = vpop.permute.xlu0 %1880
  %1882 = vrot.lane.b32.xlu0 %v1512, 105
  %v1883 = vpop.permute.xlu0 %1882
  %1884 = vrot.lane.b32.xlu0 %v1513, 105
  %v1885 = vpop.permute.xlu0 %1884
  %v1886 = vsel %vm658, %v1869, %v1871
  %v1887 = vsel %vm658, %v1871, %v1873
  %v1888 = vsel %vm658, %v1875, %v1877
  %v1889 = vsel %vm658, %v1877, %v1879
  %v1890 = vsel %vm658, %v1881, %v1883
  %v1891 = vsel %vm658, %v1883, %v1885
  %v1898 = vsel %vm68, %v1886, 0.0
  %v1899 = vsel %vm69, %v1887, 0.0
  %v1900 = vsel %vm68, %v1888, 0.0
  %v1901 = vsel %vm69, %v1889, 0.0
  %v1902 = vsel %vm68, %v1890, 0.0
  %v1903 = vsel %vm69, %v1891, 0.0
  %1904 = vmatprep.subr.mxu0 %v1899
  %1905 = vmatpush1.msra.mxu0 %v1898
  %1906 = vmatprep.subr.mxu0 %v1901
  %1907 = vmatpush1.msra.mxu0 %v1900
  %1908 = vmatprep.subr.mxu0 %v1903
  %1909 = vmatpush1.msra.mxu0 %v1902
  %1910 = vmatprep.subr.mxu0 0.0
  %1911 = vmatpush1.msra.mxu0 0.0
  %1912 = vmatprep.subr.mxu0 0.0
  %1913 = vmatpush1.msra.mxu0 0.0
  %1914 = vmatprep.subr.mxu0 0.0
  %1915 = vmatpush1.msra.mxu0 0.0
  %1916 = vmatprep.subr.mxu0 0.0
  %1917 = vmatpush1.msra.mxu0 0.0
  %1918 = vmatprep.subr.mxu0 0.0
  %1919 = vmatpush1.msra.mxu0 0.0
  %1920 = vmatprep.subr.mxu0 0.0
  %1921 = vmatpush1.msra.mxu0 0.0
  %1922 = vmatprep.subr.mxu0 0.0
  %1923 = vmatpush1.msra.mxu0 0.0
  %1924 = vmatprep.subr.mxu0 0.0
  %1925 = vmatpush1.msra.mxu0 0.0
  %1926 = vmatprep.subr.mxu0 0.0
  %1927 = vmatpush1.msra.mxu0 0.0
  %1928 = vmatprep.subr.mxu0 0.0
  %1929 = vmatpush1.msra.mxu0 0.0
  %1930 = vmatprep.subr.mxu0 0.0
  %1931 = vmatpush1.msra.mxu0 0.0
  %1932 = vmatprep.subr.mxu0 0.0
  %1933 = vmatpush1.msra.mxu0 0.0
  %1934 = vmatprep.subr.mxu0 0.0
  %1935 = vmatpush1.msra.mxu0 0.0
  %1936 = vmatprep.subr.mxu0 0.0
  %1937 = vmatpush1.msra.mxu0 0.0
  %1938 = vmatprep.subr.mxu0 0.0
  %1939 = vmatpush1.msra.mxu0 0.0
  %1940 = vmatprep.subr.mxu0 0.0
  %1941 = vmatpush1.msra.mxu0 0.0
  %1942 = vmatprep.subr.mxu0 0.0
  %1943 = vmatpush1.msra.mxu0 0.0
  %1944 = vmatprep.subr.mxu0 0.0
  %1945 = vmatpush1.msra.mxu0 0.0
  %1946 = vmatprep.subr.mxu0 0.0
  %1947 = vmatpush1.msra.mxu0 0.0
  %1948 = vmatprep.subr.mxu0 0.0
  %1949 = vmatpush1.msra.mxu0 0.0
  %1950 = vmatprep.subr.mxu0 0.0
  %1951 = vmatpush1.msra.mxu0 0.0
  %1952 = vmatprep.subr.mxu0 0.0
  %1953 = vmatpush1.msra.mxu0 0.0
  %1954 = vmatprep.subr.mxu0 0.0
  %1955 = vmatpush1.msra.mxu0 0.0
  %1956 = vmatprep.subr.mxu0 0.0
  %1957 = vmatpush1.msra.mxu0 0.0
  %1958 = vmatprep.subr.mxu0 0.0
  %1959 = vmatpush1.msra.mxu0 0.0
  %1960 = vmatprep.subr.mxu0 0.0
  %1961 = vmatpush1.msra.mxu0 0.0
  %1962 = vmatprep.subr.mxu0 0.0
  %1963 = vmatpush1.msra.mxu0 0.0
  %1964 = vmatprep.subr.mxu0 0.0
  %1965 = vmatpush1.msra.mxu0 0.0
  %1966 = vmatprep.subr.mxu0 0.0
  %1967 = vmatpush1.msra.mxu0 0.0
  %1968 = vmatprep.mubr.f32.mxu0 0.0
  %1969 = vmatmul.mubr.f32.gmra.mrb[0].mxu0 %v678
  %v1970 = vpop.f32.mrb[0].mxu0
  %v1971 = vadd.f32 0.0, %v1970
  %v1972 = vpop.f32.mrb[0].mxu0
  %v1973 = vadd.f32 0.0, %v1972
  %1974 = vmatprep.mubr.f32.mxu0 0.0
  %1975 = vmatmul.mubr.f32.gmra.mrb[0].mxu0 %v681
  %v1976 = vpop.f32.mrb[0].mxu0
  %v1977 = vadd.f32 0.0, %v1976
  %v1978 = vpop.f32.mrb[0].mxu0
  %v1979 = vadd.f32 0.0, %v1978
  %1980 = vdwg.mxu0
  %v1981 = vadd.f32 %v1864, %v1971
  %v1982 = vadd.f32 %v1865, %v1973
  %v1983 = vadd.f32 %v1866, %v1977
  %v1984 = vadd.f32 %v1867, %v1979
  %1985 = vrot.lane.b32.xlu0 %v1505, 104
  %v1986 = vpop.permute.xlu0 %1985
  %1987 = vrot.lane.b32.xlu0 %v1506, 104
  %v1988 = vpop.permute.xlu0 %1987
  %1989 = vrot.lane.b32.xlu0 %v1507, 104
  %v1990 = vpop.permute.xlu0 %1989
  %1991 = vrot.lane.b32.xlu0 %v1508, 104
  %v1992 = vpop.permute.xlu0 %1991
  %1993 = vrot.lane.b32.xlu0 %v1509, 104
  %v1994 = vpop.permute.xlu0 %1993
  %1995 = vrot.lane.b32.xlu0 %v1510, 104
  %v1996 = vpop.permute.xlu0 %1995
  %1997 = vrot.lane.b32.xlu0 %v1511, 104
  %v1998 = vpop.permute.xlu0 %1997
  %1999 = vrot.lane.b32.xlu0 %v1512, 104
  %v2000 = vpop.permute.xlu0 %1999
  %2001 = vrot.lane.b32.xlu0 %v1513, 104
  %v2002 = vpop.permute.xlu0 %2001
  %v2003 = vsel %vm782, %v1986, %v1988
  %v2004 = vsel %vm782, %v1988, %v1990
  %v2005 = vsel %vm782, %v1992, %v1994
  %v2006 = vsel %vm782, %v1994, %v1996
  %v2007 = vsel %vm782, %v1998, %v2000
  %v2008 = vsel %vm782, %v2000, %v2002
  %2015 = vmatprep.subr.mxu0 %v2004
  %2016 = vmatpush1.msra.mxu0 %v2003
  %2017 = vmatprep.subr.mxu0 %v2006
  %2018 = vmatpush1.msra.mxu0 %v2005
  %2019 = vmatprep.subr.mxu0 %v2008
  %2020 = vmatpush1.msra.mxu0 %v2007
  %2021 = vmatprep.subr.mxu0 0.0
  %2022 = vmatpush1.msra.mxu0 0.0
  %2023 = vmatprep.subr.mxu0 0.0
  %2024 = vmatpush1.msra.mxu0 0.0
  %2025 = vmatprep.subr.mxu0 0.0
  %2026 = vmatpush1.msra.mxu0 0.0
  %2027 = vmatprep.subr.mxu0 0.0
  %2028 = vmatpush1.msra.mxu0 0.0
  %2029 = vmatprep.subr.mxu0 0.0
  %2030 = vmatpush1.msra.mxu0 0.0
  %2031 = vmatprep.subr.mxu0 0.0
  %2032 = vmatpush1.msra.mxu0 0.0
  %2033 = vmatprep.subr.mxu0 0.0
  %2034 = vmatpush1.msra.mxu0 0.0
  %2035 = vmatprep.subr.mxu0 0.0
  %2036 = vmatpush1.msra.mxu0 0.0
  %2037 = vmatprep.subr.mxu0 0.0
  %2038 = vmatpush1.msra.mxu0 0.0
  %2039 = vmatprep.subr.mxu0 0.0
  %2040 = vmatpush1.msra.mxu0 0.0
  %2041 = vmatprep.subr.mxu0 0.0
  %2042 = vmatpush1.msra.mxu0 0.0
  %2043 = vmatprep.subr.mxu0 0.0
  %2044 = vmatpush1.msra.mxu0 0.0
  %2045 = vmatprep.subr.mxu0 0.0
  %2046 = vmatpush1.msra.mxu0 0.0
  %2047 = vmatprep.subr.mxu0 0.0
  %2048 = vmatpush1.msra.mxu0 0.0
  %2049 = vmatprep.subr.mxu0 0.0
  %2050 = vmatpush1.msra.mxu0 0.0
  %2051 = vmatprep.subr.mxu0 0.0
  %2052 = vmatpush1.msra.mxu0 0.0
  %2053 = vmatprep.subr.mxu0 0.0
  %2054 = vmatpush1.msra.mxu0 0.0
  %2055 = vmatprep.subr.mxu0 0.0
  %2056 = vmatpush1.msra.mxu0 0.0
  %2057 = vmatprep.subr.mxu0 0.0
  %2058 = vmatpush1.msra.mxu0 0.0
  %2059 = vmatprep.subr.mxu0 0.0
  %2060 = vmatpush1.msra.mxu0 0.0
  %2061 = vmatprep.subr.mxu0 0.0
  %2062 = vmatpush1.msra.mxu0 0.0
  %2063 = vmatprep.subr.mxu0 0.0
  %2064 = vmatpush1.msra.mxu0 0.0
  %2065 = vmatprep.subr.mxu0 0.0
  %2066 = vmatpush1.msra.mxu0 0.0
  %2067 = vmatprep.subr.mxu0 0.0
  %2068 = vmatpush1.msra.mxu0 0.0
  %2069 = vmatprep.subr.mxu0 0.0
  %2070 = vmatpush1.msra.mxu0 0.0
  %2071 = vmatprep.subr.mxu0 0.0
  %2072 = vmatpush1.msra.mxu0 0.0
  %2073 = vmatprep.subr.mxu0 0.0
  %2074 = vmatpush1.msra.mxu0 0.0
  %2075 = vmatprep.subr.mxu0 0.0
  %2076 = vmatpush1.msra.mxu0 0.0
  %2077 = vmatprep.subr.mxu0 0.0
  %2078 = vmatpush1.msra.mxu0 0.0
  %2079 = vmatprep.mubr.f32.mxu0 0.0
  %2080 = vmatmul.mubr.f32.gmra.mrb[0].mxu0 %v796
  %v2081 = vpop.f32.mrb[0].mxu0
  %v2082 = vadd.f32 0.0, %v2081
  %v2083 = vpop.f32.mrb[0].mxu0
  %v2084 = vadd.f32 0.0, %v2083
  %2085 = vmatprep.mubr.f32.mxu0 0.0
  %2086 = vmatmul.mubr.f32.gmra.mrb[0].mxu0 %v799
  %v2087 = vpop.f32.mrb[0].mxu0
  %v2088 = vadd.f32 0.0, %v2087
  %v2089 = vpop.f32.mrb[0].mxu0
  %v2090 = vadd.f32 0.0, %v2089
  %2091 = vdwg.mxu0
  %v2092 = vadd.f32 %v1981, %v2082
  %v2093 = vadd.f32 %v1982, %v2084
  %v2094 = vadd.f32 %v1983, %v2088
  %v2095 = vadd.f32 %v1984, %v2090
  %2096 = vrot.lane.b32.xlu0 %v1505, 103
  %v2097 = vpop.permute.xlu0 %2096
  %2098 = vrot.lane.b32.xlu0 %v1506, 103
  %v2099 = vpop.permute.xlu0 %2098
  %2100 = vrot.lane.b32.xlu0 %v1507, 103
  %v2101 = vpop.permute.xlu0 %2100
  %2102 = vrot.lane.b32.xlu0 %v1508, 103
  %v2103 = vpop.permute.xlu0 %2102
  %2104 = vrot.lane.b32.xlu0 %v1509, 103
  %v2105 = vpop.permute.xlu0 %2104
  %2106 = vrot.lane.b32.xlu0 %v1510, 103
  %v2107 = vpop.permute.xlu0 %2106
  %2108 = vrot.lane.b32.xlu0 %v1511, 103
  %v2109 = vpop.permute.xlu0 %2108
  %2110 = vrot.lane.b32.xlu0 %v1512, 103
  %v2111 = vpop.permute.xlu0 %2110
  %2112 = vrot.lane.b32.xlu0 %v1513, 103
  %v2113 = vpop.permute.xlu0 %2112
  %v2114 = vsel %vm900, %v2097, %v2099
  %v2115 = vsel %vm900, %v2099, %v2101
  %v2116 = vsel %vm900, %v2103, %v2105
  %v2117 = vsel %vm900, %v2105, %v2107
  %v2118 = vsel %vm900, %v2109, %v2111
  %v2119 = vsel %vm900, %v2111, %v2113
  %v2126 = vsel %vm70, %v2114, 0.0
  %v2127 = vsel %vm71, %v2115, 0.0
  %v2128 = vsel %vm70, %v2116, 0.0
  %v2129 = vsel %vm71, %v2117, 0.0
  %v2130 = vsel %vm70, %v2118, 0.0
  %v2131 = vsel %vm71, %v2119, 0.0
  %2132 = vmatprep.subr.mxu0 %v2127
  %2133 = vmatpush1.msra.mxu0 %v2126
  %2134 = vmatprep.subr.mxu0 %v2129
  %2135 = vmatpush1.msra.mxu0 %v2128
  %2136 = vmatprep.subr.mxu0 %v2131
  %2137 = vmatpush1.msra.mxu0 %v2130
  %2138 = vmatprep.subr.mxu0 0.0
  %2139 = vmatpush1.msra.mxu0 0.0
  %2140 = vmatprep.subr.mxu0 0.0
  %2141 = vmatpush1.msra.mxu0 0.0
  %2142 = vmatprep.subr.mxu0 0.0
  %2143 = vmatpush1.msra.mxu0 0.0
  %2144 = vmatprep.subr.mxu0 0.0
  %2145 = vmatpush1.msra.mxu0 0.0
  %2146 = vmatprep.subr.mxu0 0.0
  %2147 = vmatpush1.msra.mxu0 0.0
  %2148 = vmatprep.subr.mxu0 0.0
  %2149 = vmatpush1.msra.mxu0 0.0
  %2150 = vmatprep.subr.mxu0 0.0
  %2151 = vmatpush1.msra.mxu0 0.0
  %2152 = vmatprep.subr.mxu0 0.0
  %2153 = vmatpush1.msra.mxu0 0.0
  %2154 = vmatprep.subr.mxu0 0.0
  %2155 = vmatpush1.msra.mxu0 0.0
  %2156 = vmatprep.subr.mxu0 0.0
  %2157 = vmatpush1.msra.mxu0 0.0
  %2158 = vmatprep.subr.mxu0 0.0
  %2159 = vmatpush1.msra.mxu0 0.0
  %2160 = vmatprep.subr.mxu0 0.0
  %2161 = vmatpush1.msra.mxu0 0.0
  %2162 = vmatprep.subr.mxu0 0.0
  %2163 = vmatpush1.msra.mxu0 0.0
  %2164 = vmatprep.subr.mxu0 0.0
  %2165 = vmatpush1.msra.mxu0 0.0
  %2166 = vmatprep.subr.mxu0 0.0
  %2167 = vmatpush1.msra.mxu0 0.0
  %2168 = vmatprep.subr.mxu0 0.0
  %2169 = vmatpush1.msra.mxu0 0.0
  %2170 = vmatprep.subr.mxu0 0.0
  %2171 = vmatpush1.msra.mxu0 0.0
  %2172 = vmatprep.subr.mxu0 0.0
  %2173 = vmatpush1.msra.mxu0 0.0
  %2174 = vmatprep.subr.mxu0 0.0
  %2175 = vmatpush1.msra.mxu0 0.0
  %2176 = vmatprep.subr.mxu0 0.0
  %2177 = vmatpush1.msra.mxu0 0.0
  %2178 = vmatprep.subr.mxu0 0.0
  %2179 = vmatpush1.msra.mxu0 0.0
  %2180 = vmatprep.subr.mxu0 0.0
  %2181 = vmatpush1.msra.mxu0 0.0
  %2182 = vmatprep.subr.mxu0 0.0
  %2183 = vmatpush1.msra.mxu0 0.0
  %2184 = vmatprep.subr.mxu0 0.0
  %2185 = vmatpush1.msra.mxu0 0.0
  %2186 = vmatprep.subr.mxu0 0.0
  %2187 = vmatpush1.msra.mxu0 0.0
  %2188 = vmatprep.subr.mxu0 0.0
  %2189 = vmatpush1.msra.mxu0 0.0
  %2190 = vmatprep.subr.mxu0 0.0
  %2191 = vmatpush1.msra.mxu0 0.0
  %2192 = vmatprep.subr.mxu0 0.0
  %2193 = vmatpush1.msra.mxu0 0.0
  %2194 = vmatprep.subr.mxu0 0.0
  %2195 = vmatpush1.msra.mxu0 0.0
  %2196 = vmatprep.mubr.f32.mxu0 0.0
  %2197 = vmatmul.mubr.f32.gmra.mrb[0].mxu0 %v920
  %v2198 = vpop.f32.mrb[0].mxu0
  %v2199 = vadd.f32 0.0, %v2198
  %v2200 = vpop.f32.mrb[0].mxu0
  %v2201 = vadd.f32 0.0, %v2200
  %2202 = vmatprep.mubr.f32.mxu0 0.0
  %2203 = vmatmul.mubr.f32.gmra.mrb[0].mxu0 %v923
  %v2204 = vpop.f32.mrb[0].mxu0
  %v2205 = vadd.f32 0.0, %v2204
  %v2206 = vpop.f32.mrb[0].mxu0
  %v2207 = vadd.f32 0.0, %v2206
  %2208 = vdwg.mxu0
  %v2209 = vadd.f32 %v2092, %v2199
  %v2210 = vadd.f32 %v2093, %v2201
  %v2211 = vadd.f32 %v2094, %v2205
  %v2212 = vadd.f32 %v2095, %v2207
  %2213 = vrot.lane.b32.xlu0 %v1505, 89
  %v2214 = vpop.permute.xlu0 %2213
  %2215 = vrot.lane.b32.xlu0 %v1506, 89
  %v2216 = vpop.permute.xlu0 %2215
  %2217 = vrot.lane.b32.xlu0 %v1507, 89
  %v2218 = vpop.permute.xlu0 %2217
  %2219 = vrot.lane.b32.xlu0 %v1508, 89
  %v2220 = vpop.permute.xlu0 %2219
  %2221 = vrot.lane.b32.xlu0 %v1509, 89
  %v2222 = vpop.permute.xlu0 %2221
  %2223 = vrot.lane.b32.xlu0 %v1510, 89
  %v2224 = vpop.permute.xlu0 %2223
  %2225 = vrot.lane.b32.xlu0 %v1511, 89
  %v2226 = vpop.permute.xlu0 %2225
  %2227 = vrot.lane.b32.xlu0 %v1512, 89
  %v2228 = vpop.permute.xlu0 %2227
  %2229 = vrot.lane.b32.xlu0 %v1513, 89
  %v2230 = vpop.permute.xlu0 %2229
  %v2231 = vsel %vm1024, %v2214, %v2216
  %v2232 = vsel %vm1024, %v2216, %v2218
  %v2233 = vsel %vm1024, %v2220, %v2222
  %v2234 = vsel %vm1024, %v2222, %v2224
  %v2235 = vsel %vm1024, %v2226, %v2228
  %v2236 = vsel %vm1024, %v2228, %v2230
  %v2243 = vsel %vm68, %v2231, 0.0
  %v2244 = vsel %vm69, %v2232, 0.0
  %v2245 = vsel %vm68, %v2233, 0.0
  %v2246 = vsel %vm69, %v2234, 0.0
  %v2247 = vsel %vm68, %v2235, 0.0
  %v2248 = vsel %vm69, %v2236, 0.0
  %2249 = vmatprep.subr.mxu0 %v2244
  %2250 = vmatpush1.msra.mxu0 %v2243
  %2251 = vmatprep.subr.mxu0 %v2246
  %2252 = vmatpush1.msra.mxu0 %v2245
  %2253 = vmatprep.subr.mxu0 %v2248
  %2254 = vmatpush1.msra.mxu0 %v2247
  %2255 = vmatprep.subr.mxu0 0.0
  %2256 = vmatpush1.msra.mxu0 0.0
  %2257 = vmatprep.subr.mxu0 0.0
  %2258 = vmatpush1.msra.mxu0 0.0
  %2259 = vmatprep.subr.mxu0 0.0
  %2260 = vmatpush1.msra.mxu0 0.0
  %2261 = vmatprep.subr.mxu0 0.0
  %2262 = vmatpush1.msra.mxu0 0.0
  %2263 = vmatprep.subr.mxu0 0.0
  %2264 = vmatpush1.msra.mxu0 0.0
  %2265 = vmatprep.subr.mxu0 0.0
  %2266 = vmatpush1.msra.mxu0 0.0
  %2267 = vmatprep.subr.mxu0 0.0
  %2268 = vmatpush1.msra.mxu0 0.0
  %2269 = vmatprep.subr.mxu0 0.0
  %2270 = vmatpush1.msra.mxu0 0.0
  %2271 = vmatprep.subr.mxu0 0.0
  %2272 = vmatpush1.msra.mxu0 0.0
  %2273 = vmatprep.subr.mxu0 0.0
  %2274 = vmatpush1.msra.mxu0 0.0
  %2275 = vmatprep.subr.mxu0 0.0
  %2276 = vmatpush1.msra.mxu0 0.0
  %2277 = vmatprep.subr.mxu0 0.0
  %2278 = vmatpush1.msra.mxu0 0.0
  %2279 = vmatprep.subr.mxu0 0.0
  %2280 = vmatpush1.msra.mxu0 0.0
  %2281 = vmatprep.subr.mxu0 0.0
  %2282 = vmatpush1.msra.mxu0 0.0
  %2283 = vmatprep.subr.mxu0 0.0
  %2284 = vmatpush1.msra.mxu0 0.0
  %2285 = vmatprep.subr.mxu0 0.0
  %2286 = vmatpush1.msra.mxu0 0.0
  %2287 = vmatprep.subr.mxu0 0.0
  %2288 = vmatpush1.msra.mxu0 0.0
  %2289 = vmatprep.subr.mxu0 0.0
  %2290 = vmatpush1.msra.mxu0 0.0
  %2291 = vmatprep.subr.mxu0 0.0
  %2292 = vmatpush1.msra.mxu0 0.0
  %2293 = vmatprep.subr.mxu0 0.0
  %2294 = vmatpush1.msra.mxu0 0.0
  %2295 = vmatprep.subr.mxu0 0.0
  %2296 = vmatpush1.msra.mxu0 0.0
  %2297 = vmatprep.subr.mxu0 0.0
  %2298 = vmatpush1.msra.mxu0 0.0
  %2299 = vmatprep.subr.mxu0 0.0
  %2300 = vmatpush1.msra.mxu0 0.0
  %2301 = vmatprep.subr.mxu0 0.0
  %2302 = vmatpush1.msra.mxu0 0.0
  %2303 = vmatprep.subr.mxu0 0.0
  %2304 = vmatpush1.msra.mxu0 0.0
  %2305 = vmatprep.subr.mxu0 0.0
  %2306 = vmatpush1.msra.mxu0 0.0
  %2307 = vmatprep.subr.mxu0 0.0
  %2308 = vmatpush1.msra.mxu0 0.0
  %2309 = vmatprep.subr.mxu0 0.0
  %2310 = vmatpush1.msra.mxu0 0.0
  %2311 = vmatprep.subr.mxu0 0.0
  %2312 = vmatpush1.msra.mxu0 0.0
  %2313 = vmatprep.mubr.f32.mxu0 0.0
  %2314 = vmatmul.mubr.f32.gmra.mrb[0].mxu0 %v1044
  %v2315 = vpop.f32.mrb[0].mxu0
  %v2316 = vadd.f32 0.0, %v2315
  %v2317 = vpop.f32.mrb[0].mxu0
  %v2318 = vadd.f32 0.0, %v2317
  %2319 = vmatprep.mubr.f32.mxu0 0.0
  %2320 = vmatmul.mubr.f32.gmra.mrb[0].mxu0 %v1047
  %v2321 = vpop.f32.mrb[0].mxu0
  %v2322 = vadd.f32 0.0, %v2321
  %v2323 = vpop.f32.mrb[0].mxu0
  %v2324 = vadd.f32 0.0, %v2323
  %2325 = vdwg.mxu0
  %v2326 = vadd.f32 %v2209, %v2316
  %v2327 = vadd.f32 %v2210, %v2318
  %v2328 = vadd.f32 %v2211, %v2322
  %v2329 = vadd.f32 %v2212, %v2324
  %2330 = vrot.lane.b32.xlu0 %v1505, 88
  %v2331 = vpop.permute.xlu0 %2330
  %2332 = vrot.lane.b32.xlu0 %v1506, 88
  %v2333 = vpop.permute.xlu0 %2332
  %2334 = vrot.lane.b32.xlu0 %v1507, 88
  %v2335 = vpop.permute.xlu0 %2334
  %2336 = vrot.lane.b32.xlu0 %v1508, 88
  %v2337 = vpop.permute.xlu0 %2336
  %2338 = vrot.lane.b32.xlu0 %v1509, 88
  %v2339 = vpop.permute.xlu0 %2338
  %2340 = vrot.lane.b32.xlu0 %v1510, 88
  %v2341 = vpop.permute.xlu0 %2340
  %2342 = vrot.lane.b32.xlu0 %v1511, 88
  %v2343 = vpop.permute.xlu0 %2342
  %2344 = vrot.lane.b32.xlu0 %v1512, 88
  %v2345 = vpop.permute.xlu0 %2344
  %2346 = vrot.lane.b32.xlu0 %v1513, 88
  %v2347 = vpop.permute.xlu0 %2346
  %v2348 = vsel %vm1148, %v2331, %v2333
  %v2349 = vsel %vm1148, %v2333, %v2335
  %v2350 = vsel %vm1148, %v2337, %v2339
  %v2351 = vsel %vm1148, %v2339, %v2341
  %v2352 = vsel %vm1148, %v2343, %v2345
  %v2353 = vsel %vm1148, %v2345, %v2347
  %2360 = vmatprep.subr.mxu0 %v2349
  %2361 = vmatpush1.msra.mxu0 %v2348
  %2362 = vmatprep.subr.mxu0 %v2351
  %2363 = vmatpush1.msra.mxu0 %v2350
  %2364 = vmatprep.subr.mxu0 %v2353
  %2365 = vmatpush1.msra.mxu0 %v2352
  %2366 = vmatprep.subr.mxu0 0.0
  %2367 = vmatpush1.msra.mxu0 0.0
  %2368 = vmatprep.subr.mxu0 0.0
  %2369 = vmatpush1.msra.mxu0 0.0
  %2370 = vmatprep.subr.mxu0 0.0
  %2371 = vmatpush1.msra.mxu0 0.0
  %2372 = vmatprep.subr.mxu0 0.0
  %2373 = vmatpush1.msra.mxu0 0.0
  %2374 = vmatprep.subr.mxu0 0.0
  %2375 = vmatpush1.msra.mxu0 0.0
  %2376 = vmatprep.subr.mxu0 0.0
  %2377 = vmatpush1.msra.mxu0 0.0
  %2378 = vmatprep.subr.mxu0 0.0
  %2379 = vmatpush1.msra.mxu0 0.0
  %2380 = vmatprep.subr.mxu0 0.0
  %2381 = vmatpush1.msra.mxu0 0.0
  %2382 = vmatprep.subr.mxu0 0.0
  %2383 = vmatpush1.msra.mxu0 0.0
  %2384 = vmatprep.subr.mxu0 0.0
  %2385 = vmatpush1.msra.mxu0 0.0
  %2386 = vmatprep.subr.mxu0 0.0
  %2387 = vmatpush1.msra.mxu0 0.0
  %2388 = vmatprep.subr.mxu0 0.0
  %2389 = vmatpush1.msra.mxu0 0.0
  %2390 = vmatprep.subr.mxu0 0.0
  %2391 = vmatpush1.msra.mxu0 0.0
  %2392 = vmatprep.subr.mxu0 0.0
  %2393 = vmatpush1.msra.mxu0 0.0
  %2394 = vmatprep.subr.mxu0 0.0
  %2395 = vmatpush1.msra.mxu0 0.0
  %2396 = vmatprep.subr.mxu0 0.0
  %2397 = vmatpush1.msra.mxu0 0.0
  %2398 = vmatprep.subr.mxu0 0.0
  %2399 = vmatpush1.msra.mxu0 0.0
  %2400 = vmatprep.subr.mxu0 0.0
  %2401 = vmatpush1.msra.mxu0 0.0
  %2402 = vmatprep.subr.mxu0 0.0
  %2403 = vmatpush1.msra.mxu0 0.0
  %2404 = vmatprep.subr.mxu0 0.0
  %2405 = vmatpush1.msra.mxu0 0.0
  %2406 = vmatprep.subr.mxu0 0.0
  %2407 = vmatpush1.msra.mxu0 0.0
  %2408 = vmatprep.subr.mxu0 0.0
  %2409 = vmatpush1.msra.mxu0 0.0
  %2410 = vmatprep.subr.mxu0 0.0
  %2411 = vmatpush1.msra.mxu0 0.0
  %2412 = vmatprep.subr.mxu0 0.0
  %2413 = vmatpush1.msra.mxu0 0.0
  %2414 = vmatprep.subr.mxu0 0.0
  %2415 = vmatpush1.msra.mxu0 0.0
  %2416 = vmatprep.subr.mxu0 0.0
  %2417 = vmatpush1.msra.mxu0 0.0
  %2418 = vmatprep.subr.mxu0 0.0
  %2419 = vmatpush1.msra.mxu0 0.0
  %2420 = vmatprep.subr.mxu0 0.0
  %2421 = vmatpush1.msra.mxu0 0.0
  %2422 = vmatprep.subr.mxu0 0.0
  %2423 = vmatpush1.msra.mxu0 0.0
  %2424 = vmatprep.mubr.f32.mxu0 0.0
  %2425 = vmatmul.mubr.f32.gmra.mrb[0].mxu0 %v1162
  %v2426 = vpop.f32.mrb[0].mxu0
  %v2427 = vadd.f32 0.0, %v2426
  %v2428 = vpop.f32.mrb[0].mxu0
  %v2429 = vadd.f32 0.0, %v2428
  %2430 = vmatprep.mubr.f32.mxu0 0.0
  %2431 = vmatmul.mubr.f32.gmra.mrb[0].mxu0 %v1165
  %v2432 = vpop.f32.mrb[0].mxu0
  %v2433 = vadd.f32 0.0, %v2432
  %v2434 = vpop.f32.mrb[0].mxu0
  %v2435 = vadd.f32 0.0, %v2434
  %2436 = vdwg.mxu0
  %v2437 = vadd.f32 %v2326, %v2427
  %v2438 = vadd.f32 %v2327, %v2429
  %v2439 = vadd.f32 %v2328, %v2433
  %v2440 = vadd.f32 %v2329, %v2435
  %2441 = vrot.lane.b32.xlu0 %v1505, 87
  %v2442 = vpop.permute.xlu0 %2441
  %2443 = vrot.lane.b32.xlu0 %v1506, 87
  %v2444 = vpop.permute.xlu0 %2443
  %2445 = vrot.lane.b32.xlu0 %v1507, 87
  %v2446 = vpop.permute.xlu0 %2445
  %2447 = vrot.lane.b32.xlu0 %v1508, 87
  %v2448 = vpop.permute.xlu0 %2447
  %2449 = vrot.lane.b32.xlu0 %v1509, 87
  %v2450 = vpop.permute.xlu0 %2449
  %2451 = vrot.lane.b32.xlu0 %v1510, 87
  %v2452 = vpop.permute.xlu0 %2451
  %2453 = vrot.lane.b32.xlu0 %v1511, 87
  %v2454 = vpop.permute.xlu0 %2453
  %2455 = vrot.lane.b32.xlu0 %v1512, 87
  %v2456 = vpop.permute.xlu0 %2455
  %2457 = vrot.lane.b32.xlu0 %v1513, 87
  %v2458 = vpop.permute.xlu0 %2457
  %v2459 = vsel %vm1266, %v2442, %v2444
  %v2460 = vsel %vm1266, %v2444, %v2446
  %v2461 = vsel %vm1266, %v2448, %v2450
  %v2462 = vsel %vm1266, %v2450, %v2452
  %v2463 = vsel %vm1266, %v2454, %v2456
  %v2464 = vsel %vm1266, %v2456, %v2458
  %v2471 = vsel %vm70, %v2459, 0.0
  %v2472 = vsel %vm71, %v2460, 0.0
  %v2473 = vsel %vm70, %v2461, 0.0
  %v2474 = vsel %vm71, %v2462, 0.0
  %v2475 = vsel %vm70, %v2463, 0.0
  %v2476 = vsel %vm71, %v2464, 0.0
  %2477 = vmatprep.subr.mxu0 %v2472
  %2478 = vmatpush1.msra.mxu0 %v2471
  %2479 = vmatprep.subr.mxu0 %v2474
  %2480 = vmatpush1.msra.mxu0 %v2473
  %2481 = vmatprep.subr.mxu0 %v2476
  %2482 = vmatpush1.msra.mxu0 %v2475
  %2483 = vmatprep.subr.mxu0 0.0
  %2484 = vmatpush1.msra.mxu0 0.0
  %2485 = vmatprep.subr.mxu0 0.0
  %2486 = vmatpush1.msra.mxu0 0.0
  %2487 = vmatprep.subr.mxu0 0.0
  %2488 = vmatpush1.msra.mxu0 0.0
  %2489 = vmatprep.subr.mxu0 0.0
  %2490 = vmatpush1.msra.mxu0 0.0
  %2491 = vmatprep.subr.mxu0 0.0
  %2492 = vmatpush1.msra.mxu0 0.0
  %2493 = vmatprep.subr.mxu0 0.0
  %2494 = vmatpush1.msra.mxu0 0.0
  %2495 = vmatprep.subr.mxu0 0.0
  %2496 = vmatpush1.msra.mxu0 0.0
  %2497 = vmatprep.subr.mxu0 0.0
  %2498 = vmatpush1.msra.mxu0 0.0
  %2499 = vmatprep.subr.mxu0 0.0
  %2500 = vmatpush1.msra.mxu0 0.0
  %2501 = vmatprep.subr.mxu0 0.0
  %2502 = vmatpush1.msra.mxu0 0.0
  %2503 = vmatprep.subr.mxu0 0.0
  %2504 = vmatpush1.msra.mxu0 0.0
  %2505 = vmatprep.subr.mxu0 0.0
  %2506 = vmatpush1.msra.mxu0 0.0
  %2507 = vmatprep.subr.mxu0 0.0
  %2508 = vmatpush1.msra.mxu0 0.0
  %2509 = vmatprep.subr.mxu0 0.0
  %2510 = vmatpush1.msra.mxu0 0.0
  %2511 = vmatprep.subr.mxu0 0.0
  %2512 = vmatpush1.msra.mxu0 0.0
  %2513 = vmatprep.subr.mxu0 0.0
  %2514 = vmatpush1.msra.mxu0 0.0
  %2515 = vmatprep.subr.mxu0 0.0
  %2516 = vmatpush1.msra.mxu0 0.0
  %2517 = vmatprep.subr.mxu0 0.0
  %2518 = vmatpush1.msra.mxu0 0.0
  %2519 = vmatprep.subr.mxu0 0.0
  %2520 = vmatpush1.msra.mxu0 0.0
  %2521 = vmatprep.subr.mxu0 0.0
  %2522 = vmatpush1.msra.mxu0 0.0
  %2523 = vmatprep.subr.mxu0 0.0
  %2524 = vmatpush1.msra.mxu0 0.0
  %2525 = vmatprep.subr.mxu0 0.0
  %2526 = vmatpush1.msra.mxu0 0.0
  %2527 = vmatprep.subr.mxu0 0.0
  %2528 = vmatpush1.msra.mxu0 0.0
  %2529 = vmatprep.subr.mxu0 0.0
  %2530 = vmatpush1.msra.mxu0 0.0
  %2531 = vmatprep.subr.mxu0 0.0
  %2532 = vmatpush1.msra.mxu0 0.0
  %2533 = vmatprep.subr.mxu0 0.0
  %2534 = vmatpush1.msra.mxu0 0.0
  %2535 = vmatprep.subr.mxu0 0.0
  %2536 = vmatpush1.msra.mxu0 0.0
  %2537 = vmatprep.subr.mxu0 0.0
  %2538 = vmatpush1.msra.mxu0 0.0
  %2539 = vmatprep.subr.mxu0 0.0
  %2540 = vmatpush1.msra.mxu0 0.0
  %2541 = vmatprep.mubr.f32.mxu0 0.0
  %2542 = vmatmul.mubr.f32.gmra.mrb[0].mxu0 %v1286
  %v2543 = vpop.f32.mrb[0].mxu0
  %v2544 = vadd.f32 0.0, %v2543
  %v2545 = vpop.f32.mrb[0].mxu0
  %v2546 = vadd.f32 0.0, %v2545
  %2547 = vmatprep.mubr.f32.mxu0 0.0
  %2548 = vmatmul.mubr.f32.gmra.mrb[0].mxu0 %v1289
  %v2549 = vpop.f32.mrb[0].mxu0
  %v2550 = vadd.f32 0.0, %v2549
  %v2551 = vpop.f32.mrb[0].mxu0
  %v2552 = vadd.f32 0.0, %v2551
  %2553 = vdwg.mxu0
  %v2554 = vadd.f32 %v2437, %v2544
  %v2555 = vadd.f32 %v2438, %v2546
  %v2556 = vadd.f32 %v2439, %v2550
  %v2557 = vadd.f32 %v2440, %v2552
  %s2558 = scalar_lea.vmem %s7, 32
  %2559 = vst [vmem:[%s2558] sm:$0xff] %v2554
  %2560 = vst [vmem:[%s2558 + $0x8] sm:$0xff] %v2555
  %2561 = vst [vmem:[%s2558 + $0x10] sm:$0xff] %v2556
  %2562 = vst [vmem:[%s2558 + $0x18] sm:$0xff] %v2557
  // Predicated region
  $region26: #{_fused_neck.1} parent=0 // pred_check
    _
  $region27: #{_fused_neck.1} parent=0 // pred_check_branch
    %2564 = sbr.rel (0) target = $region29
  $region28: #{_fused_neck.1} parent=0 // pred_region
    _
  $region29: #{_fused_neck.1} parent=0 // pred_fallthru
    _
  // Predicated region
  $region30: #{_fused_neck.1} parent=0 // pred_check
    _
  $region31: #{_fused_neck.1} parent=0 // pred_check_branch
    %2566 = sbr.rel (0) target = $region33
  $region32: #{_fused_neck.1} parent=0 // pred_region
    _
  $region33: #{_fused_neck.1} parent=0 // pred_fallthru
    _
  // Predicated region
  $region34: #{_fused_neck.1} parent=0 // pred_check
    _
  $region35: #{_fused_neck.1} parent=0 // pred_check_branch
    %2568 = sbr.rel (0) target = $region37
  $region36: #{_fused_neck.1} parent=0 // pred_region
    _
  $region37: #{_fused_neck.1} parent=0 // pred_fallthru
    _
  // Predicated region
  $region38: #{_fused_neck.1} parent=0 // pred_check
    _
  $region39: #{_fused_neck.1} parent=0 // pred_check_branch
    %2570 = sbr.rel (0) target = $region41
  $region40: #{_fused_neck.1} parent=0 // pred_region
    _
  $region41: #{_fused_neck.1} parent=0 // pred_fallthru
    _

</llo_original>
